<compile_context>
chip_gen: v6e
topology: v6e:2x2x1
jax: 0.10.0
libtpu: 0.0.40
codegen_flags: <defaults>
</compile_context>

<pallas_src>
import functools

import numpy as np
import jax
import jax.numpy as jnp
from jax.experimental import pallas as pl
from jax.experimental.pallas import tpu as pltpu

# ----------------------------------------------------------------------------
# Configuration (matches MPN_simplenet(nfeature_dim, efeature_dim, output_dim,
# hidden_dim, n_gnn_layers, K, dropout_rate)).
# ----------------------------------------------------------------------------
NFEATURE_DIM = 32
EFEATURE_DIM = 4
HIDDEN_DIM = 32
OUTPUT_DIM = 8
N_GNN_LAYERS = 3          # -> TAGConv(H,H), TAGConv(H,H), TAGConv(H,OUT)
K = 3                     # TAGConv hops
DROPOUT_RATE = 0.0        # TODO(synk): nonzero dropout is stochastic; 0.0 == identity.
NUM_NODES = 16
BATCH_GRAPHS = 2

EATTR_PAD = 8             # edge-attr lanes (EFEATURE_DIM zero-padded to 8)


# ----------------------------------------------------------------------------
# Pallas kernel: full batched forward pass in one grid step.
# ----------------------------------------------------------------------------
def mpn_kernel(act_ref, struct_ref, slab_ref, out_ref, *,
               B, N, E, F, H, n_layers, k_hops):
    f32 = jnp.float32
    bf16 = jnp.bfloat16
    BN, BE = B * N, B * E

    # --- structure slab row offsets (bf16, block-diagonal over the batch) ---
    R_G = 0                         # [Gdst; Gsrc] stacked one-hot gather (2BE, BN)
    R_GT = 2 * BE                   # Gdst^T scatter-add               (BN, BE)
    R_AH = R_GT + BN                # [A; A^2; ...; A^K] stacked hops  (K*BN, BN)

    # --- parameter slab row offsets (f32, 128 lanes, 8-row aligned blocks) ---
    EA_WI, EA_WJ, EA_WE = 0, F, 2 * F
    EA_W2 = 2 * F + EATTR_PAD
    TAG0 = EA_W2 + H
    KW = (k_hops + 1) * H
    BIAS0 = TAG0 + n_layers * KW
    B_EA1, B_EA2, B_TAG = BIAS0, BIAS0 + 8, BIAS0 + 16

    x = act_ref[0:BN, 0:F]                        # (BN, F) f32 node features
    ea = act_ref[BN:BN + BE, 0:EATTR_PAD]         # (BE, 8) f32 edge attrs (padded)

    # ---- EdgeAggregation: x <- scatter_add_dst(MLP(x_i, x_j, e_attr)) -------
    # One stacked gather matmul: rows [0,BE) -> x_i (targets), [BE,2BE) -> x_j.
    G = struct_ref[R_G:R_G + 2 * BE, 0:BN]
    xg = jnp.dot(G, x.astype(bf16), preferred_element_type=f32)       # (2BE, F)
    xi = xg[0:BE].astype(bf16)
    xj = xg[BE:2 * BE].astype(bf16)

    Wi = slab_ref[EA_WI:EA_WI + F, 0:H].astype(bf16)
    Wj = slab_ref[EA_WJ:EA_WJ + F, 0:H].astype(bf16)
    We = slab_ref[EA_WE:EA_WE + EATTR_PAD, 0:H].astype(bf16)
    b1 = slab_ref[B_EA1:B_EA1 + 1, 0:H]
    h = (jnp.dot(xi, Wi, preferred_element_type=f32)
         + jnp.dot(xj, Wj, preferred_element_type=f32)
         + jnp.dot(ea.astype(bf16), We, preferred_element_type=f32)
         + b1)
    h = jnp.maximum(h, 0.0)

    W2 = slab_ref[EA_W2:EA_W2 + H, 0:H].astype(bf16)
    b2 = slab_ref[B_EA2:B_EA2 + 1, 0:H]
    msg = jnp.dot(h.astype(bf16), W2, preferred_element_type=f32) + b2  # (BE, H)

    GdT = struct_ref[R_GT:R_GT + BN, 0:BE]
    x = jnp.dot(GdT, msg.astype(bf16), preferred_element_type=f32)      # (BN, H)

    # ---- TAGConv stack: y = sum_k (A^k x) W_k + b; ReLU(Dropout(y)) except last
    Ahop = struct_ref[R_AH:R_AH + k_hops * BN, 0:BN]   # (K*BN, BN) bf16
    for l in range(n_layers):
        last = (l == n_layers - 1)
        wcols = 128 if last else H   # last layer zero-padded to 128 lanes (dense store)
        hops = jnp.dot(Ahop, x.astype(bf16), preferred_element_type=f32)  # (K*BN, H)
        base = TAG0 + l * KW
        y = jnp.dot(x.astype(bf16),
                    slab_ref[base:base + H, 0:wcols].astype(bf16),
                    preferred_element_type=f32)
        for k in range(k_hops):
            Wk = slab_ref[base + (k + 1) * H: base + (k + 2) * H, 0:wcols].astype(bf16)
            y = y + jnp.dot(hops[k * BN:(k + 1) * BN].astype(bf16), Wk,
                            preferred_element_type=f32)
        y = y + slab_ref[B_TAG + 8 * l: B_TAG + 8 * l + 1, 0:wcols]
        if last:
            out_ref[...] = y          # (BN, 128) lane-dense; cols >= OUTPUT_DIM are zero
        else:
            # TODO(synk): DROPOUT_RATE=0.0 -> identity; nonzero would need pltpu.prng_*.
            x = jnp.maximum(y, 0.0)


# ----------------------------------------------------------------------------
# Host-side graph / parameter packing.
# ----------------------------------------------------------------------------
def _block_diag(m, reps):
    r, c = m.shape
    out = np.zeros((reps * r, reps * c), m.dtype)
    for b in range(reps):
        out[b * r:(b + 1) * r, b * c:(b + 1) * c] = m
    return out


def build_structure_slab(edge_index, num_nodes, batch, k_hops):
    """One bf16 slab: stacked one-hot gather, scatter-add transpose, hop powers."""
    ei = np.asarray(edge_index)
    row, col = ei[0].astype(np.int64), ei[1].astype(np.int64)
    E, N, B = row.shape[0], num_nodes, batch
    BN, BE = B * N, B * E

    # gcn_norm (TAGConv convention: add_self_loops=False)
    deg = np.zeros(N, np.float32)
    np.add.at(deg, col, 1.0)
    dinv = np.where(deg > 0, deg ** -0.5, 0.0).astype(np.float32)
    norm = dinv[row] * dinv[col]
    A = np.zeros((N, N), np.float32)
    np.add.at(A, (col, row), norm)      # out[i] = sum_{e: col=i} norm_e * x[row_e]

    # hop powers computed in f32 on the host (A, A^2, ..., A^K), block-diag'd
    hop_blocks, Ak = [], A.copy()
    for _ in range(k_hops):
        hop_blocks.append(_block_diag(Ak, B))
        Ak = Ak @ A

    Gdst = np.zeros((E, N), np.float32); Gdst[np.arange(E), col] = 1.0
    Gsrc = np.zeros((E, N), np.float32); Gsrc[np.arange(E), row] = 1.0
    G = np.concatenate([_block_diag(Gdst, B), _block_diag(Gsrc, B)], axis=0)  # (2BE, BN)
    GdstT = _block_diag(Gdst, B).T.copy()                                     # (BN, BE)
    Ahop = np.concatenate(hop_blocks, axis=0)                                 # (K*BN, BN)

    width = max(BN, BE)
    rows = 2 * BE + BN + k_hops * BN
    slab = np.zeros((rows, width), np.float32)
    slab[0:2 * BE, 0:BN] = G
    slab[2 * BE:2 * BE + BN, 0:BE] = GdstT
    slab[2 * BE + BN:, 0:BN] = Ahop
    return jnp.asarray(slab, jnp.bfloat16)


def build_activation_slab(x, edge_attr):
    """One f32 slab: node features rows [0,BN), edge attrs rows [BN,BN+BE)."""
    B, N, F = x.shape
    _, E, Fe = edge_attr.shape
    BN, BE = B * N, B * E
    act = np.zeros((BN + BE, F), np.float32)
    act[:BN, :F] = np.asarray(x).reshape(BN, F)
    act[BN:, :Fe] = np.asarray(edge_attr).reshape(BE, Fe)
    return jnp.asarray(act)


def init_params_packed(key):
    """Initialize all module parameters and pack them into one (P, 128) f32 slab."""
    F, Fe, H, OUT = NFEATURE_DIM, EFEATURE_DIM, HIDDEN_DIM, OUTPUT_DIM
    L, KH = N_GNN_LAYERS, K
    assert F <= 128 and H <= 128 and OUT <= 128 and Fe <= EATTR_PAD
    KW = (KH + 1) * H
    EA_WI, EA_WJ, EA_WE = 0, F, 2 * F
    EA_W2 = 2 * F + EATTR_PAD
    TAG0 = EA_W2 + H
    BIAS0 = TAG0 + L * KW
    P = BIAS0 + 8 * (2 + L)

    keys = list(jax.random.split(key, 2 + L * (KH + 2)))

    def nk():
        return keys.pop()

    def lin(fan_in, fan_out, bias=True):
        bound = 1.0 / np.sqrt(fan_in)
        k1, k2 = jax.random.split(nk())
        W = np.asarray(jax.random.uniform(k1, (fan_out, fan_in), jnp.float32,
                                          -bound, bound))
        b = (np.asarray(jax.random.uniform(k2, (fan_out,), jnp.float32,
                                           -bound, bound)) if bias else None)
        return W, b

    slab = np.zeros((P, 128), np.float32)

    # EdgeAggregation MLP: Linear(2F+Fe, H) -> ReLU -> Linear(H, H)
    W1, b1 = lin(2 * F + Fe, H)
    W1T = W1.T                                   # rows ordered [x_i | x_j | e_attr]
    slab[EA_WI:EA_WI + F, :H] = W1T[:F]
    slab[EA_WJ:EA_WJ + F, :H] = W1T[F:2 * F]
    slab[EA_WE:EA_WE + Fe, :H] = W1T[2 * F:]
    W2, b2 = lin(H, H)
    slab[EA_W2:EA_W2 + H, :H] = W2.T
    slab[BIAS0, :H] = b1
    slab[BIAS0 + 8, :H] = b2

    # TAGConv layers: K+1 bias-free Linear(H, out) each + one bias per layer.
    for l in range(L):
        out_l = H if l < L - 1 else OUT
        for k in range(KH + 1):
            Wk, _ = lin(H, out_l, bias=False)
            slab[TAG0 + l * KW + k * H: TAG0 + l * KW + (k + 1) * H, :out_l] = Wk.T
        _, bl = lin(H, out_l)
        slab[BIAS0 + 16 + 8 * l, :out_l] = bl
    return slab


# ----------------------------------------------------------------------------
# Jitted pallas_call wrapper.
# ----------------------------------------------------------------------------
def make_forward(batch, num_nodes, num_edges):
    F, H, OUT = NFEATURE_DIM, HIDDEN_DIM, OUTPUT_DIM
    L, KH = N_GNN_LAYERS, K
    B, N, E = batch, num_nodes, num_edges
    BN, BE = B * N, B * E
    act_rows = BN + BE
    struct_rows = 2 * BE + BN + KH * BN
    struct_cols = max(BN, BE)
    P = (2 * F + EATTR_PAD + H) + L * (KH + 1) * H + 8 * (2 + L)

    kernel = functools.partial(mpn_kernel, B=B, N=N, E=E, F=F, H=H,
                               n_layers=L, k_hops=KH)

    @jax.jit
    def forward(act, struct, slab):
        out = pl.pallas_call(
            kernel,
            out_shape=jax.ShapeDtypeStruct((BN, 128), jnp.float32),
            grid=(1,),
            in_specs=[
                pl.BlockSpec((act_rows, F), lambda i: (0, 0)),            # x + edge_attr
                pl.BlockSpec((struct_rows, struct_cols), lambda i: (0, 0)),  # structure
                pl.BlockSpec((P, 128), lambda i: (0, 0)),                 # param slab
            ],
            out_specs=pl.BlockSpec((BN, 128), lambda i: (0, 0)),
            compiler_params=pltpu.CompilerParams(
                dimension_semantics=("arbitrary",)),
        )(act, struct, slab)
        # Lane-dense 128-wide store in-kernel; this slice could be fused downstream.
        return out.reshape(B, N, 128)[:, :, :OUT]

    return forward


if __name__ == "__main__":
    key = jax.random.PRNGKey(0)
    kx, ke, kp = jax.random.split(key, 3)

    B, N = BATCH_GRAPHS, NUM_NODES
    # Directed ring + a few chords (same static topology for every graph).
    src = np.concatenate([np.arange(N), np.arange(8)])
    dst = np.concatenate([(np.arange(N) + 1) % N, (np.arange(8) + 5) % N])
    edge_index = np.stack([src, dst]).astype(np.int32)          # (2, 24)
    E = edge_index.shape[1]

    x = jax.random.normal(kx, (B, N, NFEATURE_DIM), jnp.float32)
    edge_attr = jax.random.normal(ke, (B, E, EFEATURE_DIM), jnp.float32)

    # Host packing: one activation slab, one structure slab, one parameter slab.
    act = build_activation_slab(np.asarray(x), np.asarray(edge_attr))
    struct = build_structure_slab(edge_index, N, B, K)
    slab = jnp.asarray(init_params_packed(kp))

    forward = make_forward(B, N, E)
    out = forward(act, struct, slab)
    out = jax.block_until_ready(out)

    assert out.shape == (B, N, OUTPUT_DIM) and out.dtype == jnp.float32
    assert bool(jnp.all(jnp.isfinite(out)))
    print("KERNEL_OK")
</pallas_src>

<mosaic_0001>
module attributes {stable_mosaic.version = 11 : i64} {
  func.func @mpn_kernel(%arg0: i32, %arg1: memref<80x32xf32, #tpu.memory_space<vmem>>, %arg2: memref<224x48xbf16, #tpu.memory_space<vmem>>, %arg3: memref<528x128xf32, #tpu.memory_space<vmem>>, %arg4: memref<32x128xf32, #tpu.memory_space<vmem>>) attributes {dimension_semantics = [#tpu.dimension_semantics<arbitrary>], iteration_bounds = array<i64: 1>, scalar_prefetch = 0 : i64, scratch_operands = 0 : i64, tpu.core_type = #tpu.core_type<tc>, window_params = [{pipeline_mode = #tpu.pipeline_mode<synchronous>, transform_indices = @transform_0, window_bounds = array<i64: 80, 32>}, {pipeline_mode = #tpu.pipeline_mode<synchronous>, transform_indices = @transform_1, window_bounds = array<i64: 224, 48>}, {pipeline_mode = #tpu.pipeline_mode<synchronous>, transform_indices = @transform_2, window_bounds = array<i64: 528, 128>}, {pipeline_mode = #tpu.pipeline_mode<synchronous>, transform_indices = @transform_3, window_bounds = array<i64: 32, 128>}]} {
    %c0 = arith.constant 0 : index
    %c0_0 = arith.constant 0 : index
    %0 = vector.load %arg1[%c0, %c0_0] : memref<80x32xf32, #tpu.memory_space<vmem>>, vector<32x32xf32>
    %c32 = arith.constant 32 : index
    %c0_1 = arith.constant 0 : index
    %1 = vector.load %arg1[%c32, %c0_1] : memref<80x32xf32, #tpu.memory_space<vmem>>, vector<48x8xf32>
    %c0_2 = arith.constant 0 : index
    %c0_3 = arith.constant 0 : index
    %2 = vector.load %arg2[%c0_2, %c0_3] : memref<224x48xbf16, #tpu.memory_space<vmem>>, vector<96x32xbf16>
    %3 = arith.truncf %0 : vector<32x32xf32> to vector<32x32xbf16>
    %cst = arith.constant dense<0.000000e+00> : vector<96x32xf32>
    %4 = tpu.matmul %2, %3, %cst {dimension_numbers = #tpu.dot_dimension_numbers<[1], [0], [0], [1], [0, 0, 1, 1], [], []>} : vector<96x32xbf16>, vector<32x32xbf16>, vector<96x32xf32> -> vector<96x32xf32>
    %5 = vector.extract_strided_slice %4 {offsets = [0, 0], sizes = [48, 32], strides = [1, 1]} : vector<96x32xf32> to vector<48x32xf32>
    %6 = arith.truncf %5 : vector<48x32xf32> to vector<48x32xbf16>
    %7 = vector.extract_strided_slice %4 {offsets = [48, 0], sizes = [48, 32], strides = [1, 1]} : vector<96x32xf32> to vector<48x32xf32>
    %8 = arith.truncf %7 : vector<48x32xf32> to vector<48x32xbf16>
    %c0_4 = arith.constant 0 : index
    %c0_5 = arith.constant 0 : index
    %9 = vector.load %arg3[%c0_4, %c0_5] : memref<528x128xf32, #tpu.memory_space<vmem>>, vector<32x32xf32>
    %10 = arith.truncf %9 : vector<32x32xf32> to vector<32x32xbf16>
    %c32_6 = arith.constant 32 : index
    %c0_7 = arith.constant 0 : index
    %11 = vector.load %arg3[%c32_6, %c0_7] : memref<528x128xf32, #tpu.memory_space<vmem>>, vector<32x32xf32>
    %12 = arith.truncf %11 : vector<32x32xf32> to vector<32x32xbf16>
    %c64 = arith.constant 64 : index
    %c0_8 = arith.constant 0 : index
    %13 = vector.load %arg3[%c64, %c0_8] : memref<528x128xf32, #tpu.memory_space<vmem>>, vector<8x32xf32>
    %14 = arith.truncf %13 : vector<8x32xf32> to vector<8x32xbf16>
    %c488 = arith.constant 488 : index
    %c0_9 = arith.constant 0 : index
    %15 = vector.load %arg3[%c488, %c0_9] : memref<528x128xf32, #tpu.memory_space<vmem>>, vector<1x32xf32>
    %cst_10 = arith.constant dense<0.000000e+00> : vector<48x32xf32>
    %16 = tpu.matmul %6, %10, %cst_10 {dimension_numbers = #tpu.dot_dimension_numbers<[1], [0], [0], [1], [0, 0, 1, 1], [], []>} : vector<48x32xbf16>, vector<32x32xbf16>, vector<48x32xf32> -> vector<48x32xf32>
    %cst_11 = arith.constant dense<0.000000e+00> : vector<48x32xf32>
    %17 = tpu.matmul %8, %12, %cst_11 {dimension_numbers = #tpu.dot_dimension_numbers<[1], [0], [0], [1], [0, 0, 1, 1], [], []>} : vector<48x32xbf16>, vector<32x32xbf16>, vector<48x32xf32> -> vector<48x32xf32>
    %18 = arith.addf %16, %17 : vector<48x32xf32>
    %19 = arith.truncf %1 : vector<48x8xf32> to vector<48x8xbf16>
    %cst_12 = arith.constant dense<0.000000e+00> : vector<48x32xf32>
    %20 = tpu.matmul %19, %14, %cst_12 {dimension_numbers = #tpu.dot_dimension_numbers<[1], [0], [0], [1], [0, 0, 1, 1], [], []>} : vector<48x8xbf16>, vector<8x32xbf16>, vector<48x32xf32> -> vector<48x32xf32>
    %21 = arith.addf %18, %20 : vector<48x32xf32>
    %22 = vector.broadcast %15 : vector<1x32xf32> to vector<48x32xf32>
    %23 = arith.addf %21, %22 : vector<48x32xf32>
    %cst_13 = arith.constant 0.000000e+00 : f32
    %24 = vector.broadcast %cst_13 : f32 to vector<48x32xf32>
    %25 = arith.maximumf %23, %24 : vector<48x32xf32>
    %c72 = arith.constant 72 : index
    %c0_14 = arith.constant 0 : index
    %26 = vector.load %arg3[%c72, %c0_14] : memref<528x128xf32, #tpu.memory_space<vmem>>, vector<32x32xf32>
    %27 = arith.truncf %26 : vector<32x32xf32> to vector<32x32xbf16>
    %c496 = arith.constant 496 : index
    %c0_15 = arith.constant 0 : index
    %28 = vector.load %arg3[%c496, %c0_15] : memref<528x128xf32, #tpu.memory_space<vmem>>, vector<1x32xf32>
    %29 = arith.truncf %25 : vector<48x32xf32> to vector<48x32xbf16>
    %cst_16 = arith.constant dense<0.000000e+00> : vector<48x32xf32>
    %30 = tpu.matmul %29, %27, %cst_16 {dimension_numbers = #tpu.dot_dimension_numbers<[1], [0], [0], [1], [0, 0, 1, 1], [], []>} : vector<48x32xbf16>, vector<32x32xbf16>, vector<48x32xf32> -> vector<48x32xf32>
    %31 = vector.broadcast %28 : vector<1x32xf32> to vector<48x32xf32>
    %32 = arith.addf %30, %31 : vector<48x32xf32>
    %c96 = arith.constant 96 : index
    %c0_17 = arith.constant 0 : index
    %33 = vector.load %arg2[%c96, %c0_17] : memref<224x48xbf16, #tpu.memory_space<vmem>>, vector<32x48xbf16>
    %34 = arith.truncf %32 : vector<48x32xf32> to vector<48x32xbf16>
    %cst_18 = arith.constant dense<0.000000e+00> : vector<32x32xf32>
    %35 = tpu.matmul %33, %34, %cst_18 {dimension_numbers = #tpu.dot_dimension_numbers<[1], [0], [0], [1], [0, 0, 1, 1], [], []>} : vector<32x48xbf16>, vector<48x32xbf16>, vector<32x32xf32> -> vector<32x32xf32>
    %c128 = arith.constant 128 : index
    %c0_19 = arith.constant 0 : index
    %36 = vector.load %arg2[%c128, %c0_19] : memref<224x48xbf16, #tpu.memory_space<vmem>>, vector<96x32xbf16>
    %37 = arith.truncf %35 : vector<32x32xf32> to vector<32x32xbf16>
    %cst_20 = arith.constant dense<0.000000e+00> : vector<96x32xf32>
    %38 = tpu.matmul %36, %37, %cst_20 {dimension_numbers = #tpu.dot_dimension_numbers<[1], [0], [0], [1], [0, 0, 1, 1], [], []>} : vector<96x32xbf16>, vector<32x32xbf16>, vector<96x32xf32> -> vector<96x32xf32>
    %39 = arith.truncf %35 : vector<32x32xf32> to vector<32x32xbf16>
    %c104 = arith.constant 104 : index
    %c0_21 = arith.constant 0 : index
    %40 = vector.load %arg3[%c104, %c0_21] : memref<528x128xf32, #tpu.memory_space<vmem>>, vector<32x32xf32>
    %41 = arith.truncf %40 : vector<32x32xf32> to vector<32x32xbf16>
    %cst_22 = arith.constant dense<0.000000e+00> : vector<32x32xf32>
    %42 = tpu.matmul %39, %41, %cst_22 {dimension_numbers = #tpu.dot_dimension_numbers<[1], [0], [0], [1], [0, 0, 1, 1], [], []>} : vector<32x32xbf16>, vector<32x32xbf16>, vector<32x32xf32> -> vector<32x32xf32>
    %c136 = arith.constant 136 : index
    %c0_23 = arith.constant 0 : index
    %43 = vector.load %arg3[%c136, %c0_23] : memref<528x128xf32, #tpu.memory_space<vmem>>, vector<32x32xf32>
    %44 = arith.truncf %43 : vector<32x32xf32> to vector<32x32xbf16>
    %45 = vector.extract_strided_slice %38 {offsets = [0, 0], sizes = [32, 32], strides = [1, 1]} : vector<96x32xf32> to vector<32x32xf32>
    %46 = arith.truncf %45 : vector<32x32xf32> to vector<32x32xbf16>
    %cst_24 = arith.constant dense<0.000000e+00> : vector<32x32xf32>
    %47 = tpu.matmul %46, %44, %cst_24 {dimension_numbers = #tpu.dot_dimension_numbers<[1], [0], [0], [1], [0, 0, 1, 1], [], []>} : vector<32x32xbf16>, vector<32x32xbf16>, vector<32x32xf32> -> vector<32x32xf32>
    %48 = arith.addf %42, %47 : vector<32x32xf32>
    %c168 = arith.constant 168 : index
    %c0_25 = arith.constant 0 : index
    %49 = vector.load %arg3[%c168, %c0_25] : memref<528x128xf32, #tpu.memory_space<vmem>>, vector<32x32xf32>
    %50 = arith.truncf %49 : vector<32x32xf32> to vector<32x32xbf16>
    %51 = vector.extract_strided_slice %38 {offsets = [32, 0], sizes = [32, 32], strides = [1, 1]} : vector<96x32xf32> to vector<32x32xf32>
    %52 = arith.truncf %51 : vector<32x32xf32> to vector<32x32xbf16>
    %cst_26 = arith.constant dense<0.000000e+00> : vector<32x32xf32>
    %53 = tpu.matmul %52, %50, %cst_26 {dimension_numbers = #tpu.dot_dimension_numbers<[1], [0], [0], [1], [0, 0, 1, 1], [], []>} : vector<32x32xbf16>, vector<32x32xbf16>, vector<32x32xf32> -> vector<32x32xf32>
    %54 = arith.addf %48, %53 : vector<32x32xf32>
    %c200 = arith.constant 200 : index
    %c0_27 = arith.constant 0 : index
    %55 = vector.load %arg3[%c200, %c0_27] : memref<528x128xf32, #tpu.memory_space<vmem>>, vector<32x32xf32>
    %56 = arith.truncf %55 : vector<32x32xf32> to vector<32x32xbf16>
    %57 = vector.extract_strided_slice %38 {offsets = [64, 0], sizes = [32, 32], strides = [1, 1]} : vector<96x32xf32> to vector<32x32xf32>
    %58 = arith.truncf %57 : vector<32x32xf32> to vector<32x32xbf16>
    %cst_28 = arith.constant dense<0.000000e+00> : vector<32x32xf32>
    %59 = tpu.matmul %58, %56, %cst_28 {dimension_numbers = #tpu.dot_dimension_numbers<[1], [0], [0], [1], [0, 0, 1, 1], [], []>} : vector<32x32xbf16>, vector<32x32xbf16>, vector<32x32xf32> -> vector<32x32xf32>
    %60 = arith.addf %54, %59 : vector<32x32xf32>
    %c504 = arith.constant 504 : index
    %c0_29 = arith.constant 0 : index
    %61 = vector.load %arg3[%c504, %c0_29] : memref<528x128xf32, #tpu.memory_space<vmem>>, vector<1x32xf32>
    %62 = vector.broadcast %61 : vector<1x32xf32> to vector<32x32xf32>
    %63 = arith.addf %60, %62 : vector<32x32xf32>
    %cst_30 = arith.constant 0.000000e+00 : f32
    %64 = vector.broadcast %cst_30 : f32 to vector<32x32xf32>
    %65 = arith.maximumf %63, %64 : vector<32x32xf32>
    %66 = arith.truncf %65 : vector<32x32xf32> to vector<32x32xbf16>
    %cst_31 = arith.constant dense<0.000000e+00> : vector<96x32xf32>
    %67 = tpu.matmul %36, %66, %cst_31 {dimension_numbers = #tpu.dot_dimension_numbers<[1], [0], [0], [1], [0, 0, 1, 1], [], []>} : vector<96x32xbf16>, vector<32x32xbf16>, vector<96x32xf32> -> vector<96x32xf32>
    %68 = arith.truncf %65 : vector<32x32xf32> to vector<32x32xbf16>
    %c232 = arith.constant 232 : index
    %c0_32 = arith.constant 0 : index
    %69 = vector.load %arg3[%c232, %c0_32] : memref<528x128xf32, #tpu.memory_space<vmem>>, vector<32x32xf32>
    %70 = arith.truncf %69 : vector<32x32xf32> to vector<32x32xbf16>
    %cst_33 = arith.constant dense<0.000000e+00> : vector<32x32xf32>
    %71 = tpu.matmul %68, %70, %cst_33 {dimension_numbers = #tpu.dot_dimension_numbers<[1], [0], [0], [1], [0, 0, 1, 1], [], []>} : vector<32x32xbf16>, vector<32x32xbf16>, vector<32x32xf32> -> vector<32x32xf32>
    %c264 = arith.constant 264 : index
    %c0_34 = arith.constant 0 : index
    %72 = vector.load %arg3[%c264, %c0_34] : memref<528x128xf32, #tpu.memory_space<vmem>>, vector<32x32xf32>
    %73 = arith.truncf %72 : vector<32x32xf32> to vector<32x32xbf16>
    %74 = vector.extract_strided_slice %67 {offsets = [0, 0], sizes = [32, 32], strides = [1, 1]} : vector<96x32xf32> to vector<32x32xf32>
    %75 = arith.truncf %74 : vector<32x32xf32> to vector<32x32xbf16>
    %cst_35 = arith.constant dense<0.000000e+00> : vector<32x32xf32>
    %76 = tpu.matmul %75, %73, %cst_35 {dimension_numbers = #tpu.dot_dimension_numbers<[1], [0], [0], [1], [0, 0, 1, 1], [], []>} : vector<32x32xbf16>, vector<32x32xbf16>, vector<32x32xf32> -> vector<32x32xf32>
    %77 = arith.addf %71, %76 : vector<32x32xf32>
    %c296 = arith.constant 296 : index
    %c0_36 = arith.constant 0 : index
    %78 = vector.load %arg3[%c296, %c0_36] : memref<528x128xf32, #tpu.memory_space<vmem>>, vector<32x32xf32>
    %79 = arith.truncf %78 : vector<32x32xf32> to vector<32x32xbf16>
    %80 = vector.extract_strided_slice %67 {offsets = [32, 0], sizes = [32, 32], strides = [1, 1]} : vector<96x32xf32> to vector<32x32xf32>
    %81 = arith.truncf %80 : vector<32x32xf32> to vector<32x32xbf16>
    %cst_37 = arith.constant dense<0.000000e+00> : vector<32x32xf32>
    %82 = tpu.matmul %81, %79, %cst_37 {dimension_numbers = #tpu.dot_dimension_numbers<[1], [0], [0], [1], [0, 0, 1, 1], [], []>} : vector<32x32xbf16>, vector<32x32xbf16>, vector<32x32xf32> -> vector<32x32xf32>
    %83 = arith.addf %77, %82 : vector<32x32xf32>
    %c328 = arith.constant 328 : index
    %c0_38 = arith.constant 0 : index
    %84 = vector.load %arg3[%c328, %c0_38] : memref<528x128xf32, #tpu.memory_space<vmem>>, vector<32x32xf32>
    %85 = arith.truncf %84 : vector<32x32xf32> to vector<32x32xbf16>
    %86 = vector.extract_strided_slice %67 {offsets = [64, 0], sizes = [32, 32], strides = [1, 1]} : vector<96x32xf32> to vector<32x32xf32>
    %87 = arith.truncf %86 : vector<32x32xf32> to vector<32x32xbf16>
    %cst_39 = arith.constant dense<0.000000e+00> : vector<32x32xf32>
    %88 = tpu.matmul %87, %85, %cst_39 {dimension_numbers = #tpu.dot_dimension_numbers<[1], [0], [0], [1], [0, 0, 1, 1], [], []>} : vector<32x32xbf16>, vector<32x32xbf16>, vector<32x32xf32> -> vector<32x32xf32>
    %89 = arith.addf %83, %88 : vector<32x32xf32>
    %c512 = arith.constant 512 : index
    %c0_40 = arith.constant 0 : index
    %90 = vector.load %arg3[%c512, %c0_40] : memref<528x128xf32, #tpu.memory_space<vmem>>, vector<1x32xf32>
    %91 = vector.broadcast %90 : vector<1x32xf32> to vector<32x32xf32>
    %92 = arith.addf %89, %91 : vector<32x32xf32>
    %cst_41 = arith.constant 0.000000e+00 : f32
    %93 = vector.broadcast %cst_41 : f32 to vector<32x32xf32>
    %94 = arith.maximumf %92, %93 : vector<32x32xf32>
    %95 = arith.truncf %94 : vector<32x32xf32> to vector<32x32xbf16>
    %cst_42 = arith.constant dense<0.000000e+00> : vector<96x32xf32>
    %96 = tpu.matmul %36, %95, %cst_42 {dimension_numbers = #tpu.dot_dimension_numbers<[1], [0], [0], [1], [0, 0, 1, 1], [], []>} : vector<96x32xbf16>, vector<32x32xbf16>, vector<96x32xf32> -> vector<96x32xf32>
    %97 = arith.truncf %94 : vector<32x32xf32> to vector<32x32xbf16>
    %c360 = arith.constant 360 : index
    %c0_43 = arith.constant 0 : index
    %98 = vector.load %arg3[%c360, %c0_43] : memref<528x128xf32, #tpu.memory_space<vmem>>, vector<32x128xf32>
    %99 = arith.truncf %98 : vector<32x128xf32> to vector<32x128xbf16>
    %cst_44 = arith.constant dense<0.000000e+00> : vector<32x128xf32>
    %100 = tpu.matmul %97, %99, %cst_44 {dimension_numbers = #tpu.dot_dimension_numbers<[1], [0], [0], [1], [0, 0, 1, 1], [], []>} : vector<32x32xbf16>, vector<32x128xbf16>, vector<32x128xf32> -> vector<32x128xf32>
    %c392 = arith.constant 392 : index
    %c0_45 = arith.constant 0 : index
    %101 = vector.load %arg3[%c392, %c0_45] : memref<528x128xf32, #tpu.memory_space<vmem>>, vector<32x128xf32>
    %102 = arith.truncf %101 : vector<32x128xf32> to vector<32x128xbf16>
    %103 = vector.extract_strided_slice %96 {offsets = [0, 0], sizes = [32, 32], strides = [1, 1]} : vector<96x32xf32> to vector<32x32xf32>
    %104 = arith.truncf %103 : vector<32x32xf32> to vector<32x32xbf16>
    %cst_46 = arith.constant dense<0.000000e+00> : vector<32x128xf32>
    %105 = tpu.matmul %104, %102, %cst_46 {dimension_numbers = #tpu.dot_dimension_numbers<[1], [0], [0], [1], [0, 0, 1, 1], [], []>} : vector<32x32xbf16>, vector<32x128xbf16>, vector<32x128xf32> -> vector<32x128xf32>
    %106 = arith.addf %100, %105 : vector<32x128xf32>
    %c424 = arith.constant 424 : index
    %c0_47 = arith.constant 0 : index
    %107 = vector.load %arg3[%c424, %c0_47] : memref<528x128xf32, #tpu.memory_space<vmem>>, vector<32x128xf32>
    %108 = arith.truncf %107 : vector<32x128xf32> to vector<32x128xbf16>
    %109 = vector.extract_strided_slice %96 {offsets = [32, 0], sizes = [32, 32], strides = [1, 1]} : vector<96x32xf32> to vector<32x32xf32>
    %110 = arith.truncf %109 : vector<32x32xf32> to vector<32x32xbf16>
    %cst_48 = arith.constant dense<0.000000e+00> : vector<32x128xf32>
    %111 = tpu.matmul %110, %108, %cst_48 {dimension_numbers = #tpu.dot_dimension_numbers<[1], [0], [0], [1], [0, 0, 1, 1], [], []>} : vector<32x32xbf16>, vector<32x128xbf16>, vector<32x128xf32> -> vector<32x128xf32>
    %112 = arith.addf %106, %111 : vector<32x128xf32>
    %c456 = arith.constant 456 : index
    %c0_49 = arith.constant 0 : index
    %113 = vector.load %arg3[%c456, %c0_49] : memref<528x128xf32, #tpu.memory_space<vmem>>, vector<32x128xf32>
    %114 = arith.truncf %113 : vector<32x128xf32> to vector<32x128xbf16>
    %115 = vector.extract_strided_slice %96 {offsets = [64, 0], sizes = [32, 32], strides = [1, 1]} : vector<96x32xf32> to vector<32x32xf32>
    %116 = arith.truncf %115 : vector<32x32xf32> to vector<32x32xbf16>
    %cst_50 = arith.constant dense<0.000000e+00> : vector<32x128xf32>
    %117 = tpu.matmul %116, %114, %cst_50 {dimension_numbers = #tpu.dot_dimension_numbers<[1], [0], [0], [1], [0, 0, 1, 1], [], []>} : vector<32x32xbf16>, vector<32x128xbf16>, vector<32x128xf32> -> vector<32x128xf32>
    %118 = arith.addf %112, %117 : vector<32x128xf32>
    %c520 = arith.constant 520 : index
    %c0_51 = arith.constant 0 : index
    %119 = vector.load %arg3[%c520, %c0_51] : memref<528x128xf32, #tpu.memory_space<vmem>>, vector<1x128xf32>
    %120 = vector.broadcast %119 : vector<1x128xf32> to vector<32x128xf32>
    %121 = arith.addf %118, %120 : vector<32x128xf32>
    %c0_52 = arith.constant 0 : index
    %c0_53 = arith.constant 0 : index
    %122 = vector.load %arg4[%c0_52, %c0_53] : memref<32x128xf32, #tpu.memory_space<vmem>>, vector<32x128xf32>
    tpu.vector_store %arg4[%c0_52, %c0_53], %121 {strides = array<i32>} : memref<32x128xf32, #tpu.memory_space<vmem>>, vector<32x128xf32>,
    return
  }
  func.func @transform_0(%arg0: i32) -> (i32, i32) {
    %c0_i32 = arith.constant 0 : i32
    %c0_i32_0 = arith.constant 0 : i32
    %c0_i32_1 = arith.constant 0 : i32
    return %c0_i32, %c0_i32_0 : i32, i32
  }
  func.func @transform_1(%arg0: i32) -> (i32, i32) {
    %c0_i32 = arith.constant 0 : i32
    %c0_i32_0 = arith.constant 0 : i32
    %c0_i32_1 = arith.constant 0 : i32
    return %c0_i32, %c0_i32_0 : i32, i32
  }
  func.func @transform_2(%arg0: i32) -> (i32, i32) {
    %c0_i32 = arith.constant 0 : i32
    %c0_i32_0 = arith.constant 0 : i32
    %c0_i32_1 = arith.constant 0 : i32
    return %c0_i32, %c0_i32_0 : i32, i32
  }
  func.func @transform_3(%arg0: i32) -> (i32, i32) {
    %c0_i32 = arith.constant 0 : i32
    %c0_i32_0 = arith.constant 0 : i32
    %c0_i32_1 = arith.constant 0 : i32
    return %c0_i32, %c0_i32_0 : i32, i32
  }
}

</mosaic_0001>

<llo_original>
// kernel: forward.1
$region0: #{forward.1}
  #allocation0 [shape = 'u32[]', space=smem, size = 0x4, offset = 0x4, fixed_abs, tag = 'smem constant byte address 0x4 - core index']
  #allocation1 [shape = 'u32[144,128]{1,0:T(1,128)}', space=vmem, size = 0x12000, scoped, tag = 'internal scratch']
  %s0 = inlined_call_operand.vmem [shape: f32[80,32], index: 0, kind: input, shape index: {}]
  %s1 = inlined_call_operand.vmem [shape: bf16[224,48], index: 1, kind: input, shape index: {}]
  %s2 = inlined_call_operand.hbm [shape: f32[528,128], index: 2, kind: input, shape index: {}]
  %s3 = inlined_call_operand.vmem [shape: f32[32,128], index: 3, kind: output, shape index: {}]
  %s4 = sld [smem:[#allocation0]]
  $region26: #{forward.1} parent=0
    _
  %s6 = ssub.s32 1, %s4
  %s7 = scalar_select 0, %s6, %s4
  $region1: #{forward.1} parent=0
    #allocation2 [shape = 'u8[270336]{0}', space=vmem, size = 0x42000, scoped, tag = 'input window, operand 2, single buffered']
    #allocation3 [shape = 's32[1]{0}', space=sflag, size = 0x4, scoped, tag = 'scoped memory for forward.1']
    %8 = vsyncpa [#allocation3], 0
    // Predicated region
    $region2: #{forward.1} parent=1 // pred_check
      _
    $region3: #{forward.1} parent=1 // pred_check_branch
      %10 = sbr.rel (0) target = $region5
    $region4: #{forward.1} parent=1 // pred_region
      _
    $region5: #{forward.1} parent=1 // pred_fallthru
      _
    // Predicated region
    $region6: #{forward.1} parent=1 // pred_check
      _
    $region7: #{forward.1} parent=1 // pred_check_branch
      %12 = sbr.rel (0) target = $region9
    $region8: #{forward.1} parent=1 // pred_region
      _
    $region9: #{forward.1} parent=1 // pred_fallthru
      _
    // Predicated region
    $region10: #{forward.1} parent=1 // pred_check
      _
    $region11: #{forward.1} parent=1 // pred_check_branch
      %14 = sbr.rel (0) target = $region13
    $region12: #{forward.1} parent=1 // pred_region
      %s16 = ssub.s32 8448, 8448
      %17 = vsyncadd [#allocation3], %s16
      %s18 = sshll.u32 [#allocation2], 4
      %s19 = int_to_ptr.vmem [resolvable:$true] %s18
      %24 = dma.hbm_to_vmem [thread:$0]  %s2, 8448, %s19, [#allocation3], 128, 128, 8
    $region13: #{forward.1} parent=1 // pred_fallthru
      _
    // Predicated region
    $region14: #{forward.1} parent=1 // pred_check
      _
    $region15: #{forward.1} parent=1 // pred_check_branch
      %26 = sbr.rel (0) target = $region17
    $region16: #{forward.1} parent=1 // pred_region
      %27 = dma.done [#allocation3], 8448
    $region17: #{forward.1} parent=1 // pred_fallthru
      _
    %v29 = vld [vmem:[%s0] sm:$0xff]
    %v30 = vld [vmem:[%s0 + $0x8] sm:$0xff]
    %v31 = vld [vmem:[%s0 + $0x10] sm:$0xff]
    %v32 = vld [vmem:[%s0 + $0x18] sm:$0xff]
    %v33 = vld [vmem:[%s0 + $0x20] sm:$0xff]
    %v34 = vld [vmem:[%s0 + $0x28] sm:$0xff]
    %v35 = vld [vmem:[%s0 + $0x30] sm:$0xff]
    %v36 = vld [vmem:[%s0 + $0x38] sm:$0xff]
    %v37 = vld [vmem:[%s0 + $0x40] sm:$0xff]
    %v38 = vld [vmem:[%s0 + $0x48] sm:$0xff]
    %v39 = vld [vmem:[%s1] sm:$0xf]
    %v40 = vld [vmem:[%s1 + $0x4] sm:$0xf]
    %v41 = vld [vmem:[%s1 + $0x8] sm:$0xf]
    %v42 = vld [vmem:[%s1 + $0xc] sm:$0xf]
    %v43 = vld [vmem:[%s1 + $0x10] sm:$0xf]
    %v44 = vld [vmem:[%s1 + $0x14] sm:$0xf]
    %v45 = vld [vmem:[%s1 + $0x18] sm:$0xf]
    %v46 = vld [vmem:[%s1 + $0x1c] sm:$0xf]
    %v47 = vld [vmem:[%s1 + $0x20] sm:$0xf]
    %v48 = vld [vmem:[%s1 + $0x24] sm:$0xf]
    %v49 = vld [vmem:[%s1 + $0x28] sm:$0xf]
    %v50 = vld [vmem:[%s1 + $0x2c] sm:$0xf]
    %v51 = vpack.c.bf16 %v30, %v29
    %v52 = vpack.c.bf16 %v32, %v31
    %v65 = vunpack.c.l.b16 %v39
    %v66 = vunpack.c.l.b16 %v40
    %v67 = vunpack.c.l.b16 %v41
    %v68 = vunpack.c.l.b16 %v42
    %v69 = vunpack.c.l.b16 %v43
    %v70 = vunpack.c.l.b16 %v44
    %v71 = vunpack.c.l.b16 %v45
    %v72 = vunpack.c.l.b16 %v46
    %v73 = vunpack.c.l.b16 %v47
    %v74 = vunpack.c.l.b16 %v48
    %v75 = vunpack.c.l.b16 %v49
    %v76 = vunpack.c.l.b16 %v50
    %v77 = vpack.c.b16 %v66, %v65
    %v78 = vpack.c.b16 %v68, %v67
    %v79 = vpack.c.b16 %v70, %v69
    %v80 = vpack.c.b16 %v72, %v71
    %v81 = vpack.c.b16 %v74, %v73
    %v82 = vpack.c.b16 %v76, %v75
    %vm83 = vcmask 261120
    %v85 = vsel %vm83, %v77, 0
    %v88 = vsel %vm83, %v78, 0
    %v91 = vsel %vm83, %v79, 0
    %v94 = vsel %vm83, %v80, 0
    %v97 = vsel %vm83, %v81, 0
    %v100 = vsel %vm83, %v82, 0
    %102 = vmatprep.subr.bf16.mxu0 0
    %103 = vmatpush1.bf16.msra.mxu0 0
    %104 = vmatprep.subr.bf16.mxu0 0
    %105 = vmatpush1.bf16.msra.mxu0 0
    %106 = vmatprep.subr.bf16.mxu0 0
    %107 = vmatpush1.bf16.msra.mxu0 0
    %108 = vmatprep.subr.bf16.mxu0 0
    %109 = vmatpush1.bf16.msra.mxu0 0
    %110 = vmatprep.subr.bf16.mxu0 0
    %111 = vmatpush1.bf16.msra.mxu0 0
    %112 = vmatprep.subr.bf16.mxu0 0
    %113 = vmatpush1.bf16.msra.mxu0 0
    %114 = vmatprep.subr.bf16.mxu0 0
    %115 = vmatpush1.bf16.msra.mxu0 %v52
    %116 = vmatprep.subr.bf16.mxu0 0
    %117 = vmatpush1.bf16.msra.mxu0 %v51
    %118 = vmatprep.subr.bf16.mxu0 0
    %119 = vmatpush2.bf16.msra.mxu0 0
    %120 = vmatprep.subr.bf16.mxu0 0
    %121 = vmatpush2.bf16.msra.mxu0 0
    %122 = vmatprep.subr.bf16.mxu0 0
    %123 = vmatpush2.bf16.msra.mxu0 0
    %124 = vmatprep.subr.bf16.mxu0 0
    %125 = vmatpush2.bf16.msra.mxu0 0
    %126 = vmatprep.subr.bf16.mxu0 0
    %127 = vmatpush2.bf16.msra.mxu0 0
    %128 = vmatprep.subr.bf16.mxu0 0
    %129 = vmatpush2.bf16.msra.mxu0 0
    %130 = vmatprep.subr.bf16.mxu0 0
    %131 = vmatpush2.bf16.msra.mxu0 0
    %132 = vmatprep.subr.bf16.mxu0 0
    %133 = vmatpush2.bf16.msra.mxu0 0
    %134 = vmatprep.mubr.bf16.mxu0 0
    %135 = vmatmul.mubr.bf16.gmra.mxu0 %v85
    %v136 = vpop.f32.mrf.mxu0
    %v137 = vadd.f32 0.0, %v136
    %v138 = vpop.f32.mrf.mxu0
    %v139 = vpop.f32.mrf.mxu0
    %v140 = vadd.f32 0.0, %v139
    %v141 = vpop.f32.mrf.mxu0
    %142 = vmatprep.mubr.bf16.mxu0 0
    %143 = vmatmul.mubr.bf16.gmra.mxu0 %v88
    %v144 = vpop.f32.mrf.mxu0
    %v145 = vadd.f32 0.0, %v144
    %v146 = vpop.f32.mrf.mxu0
    %v147 = vpop.f32.mrf.mxu0
    %v148 = vadd.f32 0.0, %v147
    %v149 = vpop.f32.mrf.mxu0
    %150 = vmatprep.mubr.bf16.mxu0 0
    %151 = vmatmul.mubr.bf16.gmra.mxu0 %v91
    %v152 = vpop.f32.mrf.mxu0
    %v153 = vadd.f32 0.0, %v152
    %v154 = vpop.f32.mrf.mxu0
    %v155 = vpop.f32.mrf.mxu0
    %v156 = vadd.f32 0.0, %v155
    %v157 = vpop.f32.mrf.mxu0
    %158 = vmatprep.mubr.bf16.mxu0 0
    %159 = vmatmul.mubr.bf16.gmra.mxu0 %v94
    %v160 = vpop.f32.mrf.mxu0
    %v161 = vadd.f32 0.0, %v160
    %v162 = vpop.f32.mrf.mxu0
    %v163 = vpop.f32.mrf.mxu0
    %v164 = vadd.f32 0.0, %v163
    %v165 = vpop.f32.mrf.mxu0
    %166 = vmatprep.mubr.bf16.mxu0 0
    %167 = vmatmul.mubr.bf16.gmra.mxu0 %v97
    %v168 = vpop.f32.mrf.mxu0
    %v169 = vadd.f32 0.0, %v168
    %v170 = vpop.f32.mrf.mxu0
    %v171 = vpop.f32.mrf.mxu0
    %v172 = vadd.f32 0.0, %v171
    %v173 = vpop.f32.mrf.mxu0
    %174 = vmatprep.mubr.bf16.mxu0 0
    %175 = vmatmul.mubr.bf16.gmra.mxu0 %v100
    %v176 = vpop.f32.mrf.mxu0
    %v177 = vadd.f32 0.0, %v176
    %v178 = vpop.f32.mrf.mxu0
    %v179 = vpop.f32.mrf.mxu0
    %v180 = vadd.f32 0.0, %v179
    %v181 = vpop.f32.mrf.mxu0
    %182 = vdwg.mxu0
    %v183 = vpack.c.bf16 %v140, %v137
    %v184 = vpack.c.bf16 %v148, %v145
    %v185 = vpack.c.bf16 %v156, %v153
    %v186 = vpack.c.bf16 %v164, %v161
    %v187 = vpack.c.bf16 %v172, %v169
    %v188 = vpack.c.bf16 %v180, %v177
    %v189 = vld [vmem:[#allocation2] sm:$0xff]
    %v190 = vld [vmem:[#allocation2 + $0x8] sm:$0xff]
    %v191 = vld [vmem:[#allocation2 + $0x10] sm:$0xff]
    %v192 = vld [vmem:[#allocation2 + $0x18] sm:$0xff]
    %v193 = vpack.c.bf16 %v190, %v189
    %v194 = vpack.c.bf16 %v192, %v191
    %v195 = vld [vmem:[#allocation2 + $0x20] sm:$0xff]
    %v196 = vld [vmem:[#allocation2 + $0x28] sm:$0xff]
    %v197 = vld [vmem:[#allocation2 + $0x30] sm:$0xff]
    %v198 = vld [vmem:[#allocation2 + $0x38] sm:$0xff]
    %v199 = vpack.c.bf16 %v196, %v195
    %v200 = vpack.c.bf16 %v198, %v197
    %v201 = vld [vmem:[#allocation2 + $0x40] sm:$0xff]
    %v202 = vpack.c.bf16 %v201, %v201
    %v203 = vld [vmem:[#allocation2 + $0x1e8] sm:$0x1]
    %v205 = vsel %vm83, %v186, 0
    %v208 = vsel %vm83, %v187, 0
    %v211 = vsel %vm83, %v188, 0
    %213 = vmatprep.subr.bf16.mxu0 0
    %214 = vmatpush1.bf16.msra.mxu0 0
    %215 = vmatprep.subr.bf16.mxu0 0
    %216 = vmatpush1.bf16.msra.mxu0 0
    %217 = vmatprep.subr.bf16.mxu0 0
    %218 = vmatpush1.bf16.msra.mxu0 0
    %219 = vmatprep.subr.bf16.mxu0 0
    %220 = vmatpush1.bf16.msra.mxu0 0
    %221 = vmatprep.subr.bf16.mxu0 0
    %222 = vmatpush1.bf16.msra.mxu0 0
    %223 = vmatprep.subr.bf16.mxu0 0
    %224 = vmatpush1.bf16.msra.mxu0 0
    %225 = vmatprep.subr.bf16.mxu0 0
    %226 = vmatpush1.bf16.msra.mxu0 %v200
    %227 = vmatprep.subr.bf16.mxu0 0
    %228 = vmatpush1.bf16.msra.mxu0 %v199
    %229 = vmatprep.subr.bf16.mxu0 0
    %230 = vmatpush2.bf16.msra.mxu0 0
    %231 = vmatprep.subr.bf16.mxu0 0
    %232 = vmatpush2.bf16.msra.mxu0 0
    %233 = vmatprep.subr.bf16.mxu0 0
    %234 = vmatpush2.bf16.msra.mxu0 0
    %235 = vmatprep.subr.bf16.mxu0 0
    %236 = vmatpush2.bf16.msra.mxu0 0
    %237 = vmatprep.subr.bf16.mxu0 0
    %238 = vmatpush2.bf16.msra.mxu0 0
    %239 = vmatprep.subr.bf16.mxu0 0
    %240 = vmatpush2.bf16.msra.mxu0 0
    %241 = vmatprep.subr.bf16.mxu0 0
    %242 = vmatpush2.bf16.msra.mxu0 0
    %243 = vmatprep.subr.bf16.mxu0 0
    %244 = vmatpush2.bf16.msra.mxu0 0
    %245 = vmatprep.mubr.bf16.mxu0 0
    %246 = vmatmul.mubr.bf16.gmra.mxu0 %v205
    %v247 = vpop.f32.mrf.mxu0
    %v248 = vadd.f32 0.0, %v247
    %v249 = vpop.f32.mrf.mxu0
    %v250 = vpop.f32.mrf.mxu0
    %v251 = vadd.f32 0.0, %v250
    %v252 = vpop.f32.mrf.mxu0
    %253 = vmatprep.mubr.bf16.mxu0 0
    %254 = vmatmul.mubr.bf16.gmra.mxu0 %v208
    %v255 = vpop.f32.mrf.mxu0
    %v256 = vadd.f32 0.0, %v255
    %v257 = vpop.f32.mrf.mxu0
    %v258 = vpop.f32.mrf.mxu0
    %v259 = vadd.f32 0.0, %v258
    %v260 = vpop.f32.mrf.mxu0
    %261 = vmatprep.mubr.bf16.mxu0 0
    %262 = vmatmul.mubr.bf16.gmra.mxu0 %v211
    %v263 = vpop.f32.mrf.mxu0
    %v264 = vadd.f32 0.0, %v263
    %v265 = vpop.f32.mrf.mxu0
    %v266 = vpop.f32.mrf.mxu0
    %v267 = vadd.f32 0.0, %v266
    %v268 = vpop.f32.mrf.mxu0
    %269 = vdwg.mxu0
    %v271 = vsel %vm83, %v183, 0
    %v274 = vsel %vm83, %v184, 0
    %v277 = vsel %vm83, %v185, 0
    %279 = vmatprep.subr.bf16.mxu0 0
    %280 = vmatpush1.bf16.msra.mxu0 0
    %281 = vmatprep.subr.bf16.mxu0 0
    %282 = vmatpush1.bf16.msra.mxu0 0
    %283 = vmatprep.subr.bf16.mxu0 0
    %284 = vmatpush1.bf16.msra.mxu0 0
    %285 = vmatprep.subr.bf16.mxu0 0
    %286 = vmatpush1.bf16.msra.mxu0 0
    %287 = vmatprep.subr.bf16.mxu0 0
    %288 = vmatpush1.bf16.msra.mxu0 0
    %289 = vmatprep.subr.bf16.mxu0 0
    %290 = vmatpush1.bf16.msra.mxu0 0
    %291 = vmatprep.subr.bf16.mxu0 0
    %292 = vmatpush1.bf16.msra.mxu0 %v194
    %293 = vmatprep.subr.bf16.mxu0 0
    %294 = vmatpush1.bf16.msra.mxu0 %v193
    %295 = vmatprep.subr.bf16.mxu0 0
    %296 = vmatpush2.bf16.msra.mxu0 0
    %297 = vmatprep.subr.bf16.mxu0 0
    %298 = vmatpush2.bf16.msra.mxu0 0
    %299 = vmatprep.subr.bf16.mxu0 0
    %300 = vmatpush2.bf16.msra.mxu0 0
    %301 = vmatprep.subr.bf16.mxu0 0
    %302 = vmatpush2.bf16.msra.mxu0 0
    %303 = vmatprep.subr.bf16.mxu0 0
    %304 = vmatpush2.bf16.msra.mxu0 0
    %305 = vmatprep.subr.bf16.mxu0 0
    %306 = vmatpush2.bf16.msra.mxu0 0
    %307 = vmatprep.subr.bf16.mxu0 0
    %308 = vmatpush2.bf16.msra.mxu0 0
    %309 = vmatprep.subr.bf16.mxu0 0
    %310 = vmatpush2.bf16.msra.mxu0 0
    %311 = vmatprep.mubr.bf16.mxu0 0
    %312 = vmatmul.mubr.bf16.gmra.mxu0 %v271
    %v313 = vpop.f32.mrf.mxu0
    %v314 = vadd.f32 %v248, %v313
    %v315 = vpop.f32.mrf.mxu0
    %v316 = vpop.f32.mrf.mxu0
    %v317 = vadd.f32 %v251, %v316
    %v318 = vpop.f32.mrf.mxu0
    %319 = vmatprep.mubr.bf16.mxu0 0
    %320 = vmatmul.mubr.bf16.gmra.mxu0 %v274
    %v321 = vpop.f32.mrf.mxu0
    %v322 = vadd.f32 %v256, %v321
    %v323 = vpop.f32.mrf.mxu0
    %v324 = vpop.f32.mrf.mxu0
    %v325 = vadd.f32 %v259, %v324
    %v326 = vpop.f32.mrf.mxu0
    %327 = vmatprep.mubr.bf16.mxu0 0
    %328 = vmatmul.mubr.bf16.gmra.mxu0 %v277
    %v329 = vpop.f32.mrf.mxu0
    %v330 = vadd.f32 %v264, %v329
    %v331 = vpop.f32.mrf.mxu0
    %v332 = vpop.f32.mrf.mxu0
    %v333 = vadd.f32 %v267, %v332
    %v334 = vpop.f32.mrf.mxu0
    %335 = vdwg.mxu0
    %v336 = vpack.c.bf16 %v34, %v33
    %v337 = vpack.c.bf16 %v36, %v35
    %v338 = vpack.c.bf16 %v38, %v37
    %vm339 = vcmask 64512
    %v341 = vsel %vm339, %v336, 0
    %v344 = vsel %vm339, %v337, 0
    %v347 = vsel %vm339, %v338, 0
    %vm349 = vcmask 1043456
    %v351 = vsel %vm349, %v202, 0
    %353 = vmatprep.subr.bf16.mxu0 0
    %354 = vmatpush1.bf16.msra.mxu0 0
    %355 = vmatprep.subr.bf16.mxu0 0
    %356 = vmatpush1.bf16.msra.mxu0 0
    %357 = vmatprep.subr.bf16.mxu0 0
    %358 = vmatpush1.bf16.msra.mxu0 0
    %359 = vmatprep.subr.bf16.mxu0 0
    %360 = vmatpush1.bf16.msra.mxu0 0
    %361 = vmatprep.subr.bf16.mxu0 0
    %362 = vmatpush1.bf16.msra.mxu0 0
    %363 = vmatprep.subr.bf16.mxu0 0
    %364 = vmatpush1.bf16.msra.mxu0 0
    %365 = vmatprep.subr.bf16.mxu0 0
    %366 = vmatpush1.bf16.msra.mxu0 0
    %367 = vmatprep.subr.bf16.mxu0 0
    %368 = vmatpush1.bf16.msra.mxu0 %v351
    %369 = vmatprep.subr.bf16.mxu0 0
    %370 = vmatpush2.bf16.msra.mxu0 0
    %371 = vmatprep.subr.bf16.mxu0 0
    %372 = vmatpush2.bf16.msra.mxu0 0
    %373 = vmatprep.subr.bf16.mxu0 0
    %374 = vmatpush2.bf16.msra.mxu0 0
    %375 = vmatprep.subr.bf16.mxu0 0
    %376 = vmatpush2.bf16.msra.mxu0 0
    %377 = vmatprep.subr.bf16.mxu0 0
    %378 = vmatpush2.bf16.msra.mxu0 0
    %379 = vmatprep.subr.bf16.mxu0 0
    %380 = vmatpush2.bf16.msra.mxu0 0
    %381 = vmatprep.subr.bf16.mxu0 0
    %382 = vmatpush2.bf16.msra.mxu0 0
    %383 = vmatprep.subr.bf16.mxu0 0
    %384 = vmatpush2.bf16.msra.mxu0 0
    %385 = vmatprep.mubr.bf16.mxu0 0
    %386 = vmatmul.mubr.bf16.gmra.mxu0 %v341
    %v387 = vpop.f32.mrf.mxu0
    %v388 = vadd.f32 0.0, %v387
    %v389 = vpop.f32.mrf.mxu0
    %v390 = vpop.f32.mrf.mxu0
    %v391 = vadd.f32 0.0, %v390
    %v392 = vpop.f32.mrf.mxu0
    %393 = vmatprep.mubr.bf16.mxu0 0
    %394 = vmatmul.mubr.bf16.gmra.mxu0 %v344
    %v395 = vpop.f32.mrf.mxu0
    %v396 = vadd.f32 0.0, %v395
    %v397 = vpop.f32.mrf.mxu0
    %v398 = vpop.f32.mrf.mxu0
    %v399 = vadd.f32 0.0, %v398
    %v400 = vpop.f32.mrf.mxu0
    %401 = vmatprep.mubr.bf16.mxu0 0
    %402 = vmatmul.mubr.bf16.gmra.mxu0 %v347
    %v403 = vpop.f32.mrf.mxu0
    %v404 = vadd.f32 0.0, %v403
    %v405 = vpop.f32.mrf.mxu0
    %v406 = vpop.f32.mrf.mxu0
    %v407 = vadd.f32 0.0, %v406
    %v408 = vpop.f32.mrf.mxu0
    %409 = vdwg.mxu0
    %v410 = vadd.f32 %v314, %v388
    %v411 = vadd.f32 %v317, %v391
    %v412 = vadd.f32 %v322, %v396
    %v413 = vadd.f32 %v325, %v399
    %v414 = vadd.f32 %v330, %v404
    %v415 = vadd.f32 %v333, %v407
    %v416 = vlaneseq
    %v417 = vshrl.u32 %v416, 7
    %v418 = vsub.s32 0, %v417
    %v419 = vrot.slane %v203, %v418
    %v420 = vadd.f32 %v410, %v419
    %v421 = vadd.f32 %v411, %v419
    %v422 = vadd.f32 %v412, %v419
    %v423 = vadd.f32 %v413, %v419
    %v424 = vadd.f32 %v414, %v419
    %v425 = vadd.f32 %v415, %v419
    %v426 = vmax.f32 %v420, 0.0
    %v427 = vmax.f32 %v421, 0.0
    %v428 = vmax.f32 %v422, 0.0
    %v429 = vmax.f32 %v423, 0.0
    %v430 = vmax.f32 %v424, 0.0
    %v431 = vmax.f32 %v425, 0.0
    %v432 = vld [vmem:[#allocation2 + $0x48] sm:$0xff]
    %v433 = vld [vmem:[#allocation2 + $0x50] sm:$0xff]
    %v434 = vld [vmem:[#allocation2 + $0x58] sm:$0xff]
    %v435 = vld [vmem:[#allocation2 + $0x60] sm:$0xff]
    %v436 = vpack.c.bf16 %v433, %v432
    %v437 = vpack.c.bf16 %v435, %v434
    %v438 = vld [vmem:[#allocation2 + $0x1f0] sm:$0x1]
    %v439 = vpack.c.bf16 %v427, %v426
    %v440 = vpack.c.bf16 %v429, %v428
    %v441 = vpack.c.bf16 %v431, %v430
    %v442 = vlaneseq
    %v443 = vshrl.u32 %v442, 7
    %v444 = vsub.s32 0, %v443
    %v445 = vrot.slane %v438, %v444
    %v447 = vsel %vm83, %v439, 0
    %v450 = vsel %vm83, %v440, 0
    %v453 = vsel %vm83, %v441, 0
    %455 = vmatprep.subr.bf16.mxu0 0
    %456 = vmatpush1.bf16.msra.mxu0 0
    %457 = vmatprep.subr.bf16.mxu0 0
    %458 = vmatpush1.bf16.msra.mxu0 0
    %459 = vmatprep.subr.bf16.mxu0 0
    %460 = vmatpush1.bf16.msra.mxu0 0
    %461 = vmatprep.subr.bf16.mxu0 0
    %462 = vmatpush1.bf16.msra.mxu0 0
    %463 = vmatprep.subr.bf16.mxu0 0
    %464 = vmatpush1.bf16.msra.mxu0 0
    %465 = vmatprep.subr.bf16.mxu0 0
    %466 = vmatpush1.bf16.msra.mxu0 0
    %467 = vmatprep.subr.bf16.mxu0 0
    %468 = vmatpush1.bf16.msra.mxu0 %v437
    %469 = vmatprep.subr.bf16.mxu0 0
    %470 = vmatpush1.bf16.msra.mxu0 %v436
    %471 = vmatprep.subr.bf16.mxu0 0
    %472 = vmatpush2.bf16.msra.mxu0 0
    %473 = vmatprep.subr.bf16.mxu0 0
    %474 = vmatpush2.bf16.msra.mxu0 0
    %475 = vmatprep.subr.bf16.mxu0 0
    %476 = vmatpush2.bf16.msra.mxu0 0
    %477 = vmatprep.subr.bf16.mxu0 0
    %478 = vmatpush2.bf16.msra.mxu0 0
    %479 = vmatprep.subr.bf16.mxu0 0
    %480 = vmatpush2.bf16.msra.mxu0 0
    %481 = vmatprep.subr.bf16.mxu0 0
    %482 = vmatpush2.bf16.msra.mxu0 0
    %483 = vmatprep.subr.bf16.mxu0 0
    %484 = vmatpush2.bf16.msra.mxu0 0
    %485 = vmatprep.subr.bf16.mxu0 0
    %486 = vmatpush2.bf16.msra.mxu0 0
    %487 = vmatprep.mubr.bf16.mxu0 0
    %488 = vmatmul.mubr.bf16.gmra.mxu0 %v447
    %v489 = vpop.f32.mrf.mxu0
    %v490 = vadd.f32 %v445, %v489
    %v491 = vpop.f32.mrf.mxu0
    %v492 = vpop.f32.mrf.mxu0
    %v493 = vadd.f32 %v445, %v492
    %v494 = vpop.f32.mrf.mxu0
    %495 = vmatprep.mubr.bf16.mxu0 0
    %496 = vmatmul.mubr.bf16.gmra.mxu0 %v450
    %v497 = vpop.f32.mrf.mxu0
    %v498 = vadd.f32 %v445, %v497
    %v499 = vpop.f32.mrf.mxu0
    %v500 = vpop.f32.mrf.mxu0
    %v501 = vadd.f32 %v445, %v500
    %v502 = vpop.f32.mrf.mxu0
    %503 = vmatprep.mubr.bf16.mxu0 0
    %504 = vmatmul.mubr.bf16.gmra.mxu0 %v453
    %v505 = vpop.f32.mrf.mxu0
    %v506 = vadd.f32 %v445, %v505
    %v507 = vpop.f32.mrf.mxu0
    %v508 = vpop.f32.mrf.mxu0
    %v509 = vadd.f32 %v445, %v508
    %v510 = vpop.f32.mrf.mxu0
    %511 = vdwg.mxu0
    %v512 = vld [vmem:[%s1 + $0x30] sm:$0xf]
    %v513 = vld [vmem:[%s1 + $0x34] sm:$0xf]
    %v514 = vld [vmem:[%s1 + $0x38] sm:$0xf]
    %v515 = vld [vmem:[%s1 + $0x3c] sm:$0xf]
    %v516 = vpack.c.bf16 %v493, %v490
    %v517 = vpack.c.bf16 %v501, %v498
    %v518 = vpack.c.bf16 %v509, %v506
    %v523 = vunpack.c.l.b16 %v512
    %v524 = vunpack.c.l.b16 %v513
    %v525 = vunpack.c.l.b16 %v514
    %v526 = vunpack.c.l.b16 %v515
    %v527 = vpack.c.b16 %v524, %v523
    %v528 = vpack.c.b16 %v526, %v525
    %vm529 = vcmask 392192
    %v531 = vsel %vm529, %v527, 0
    %v534 = vsel %vm529, %v528, 0
    %536 = vmatprep.subr.bf16.mxu0 0
    %537 = vmatpush1.bf16.msra.mxu0 0
    %538 = vmatprep.subr.bf16.mxu0 0
    %539 = vmatpush1.bf16.msra.mxu0 0
    %540 = vmatprep.subr.bf16.mxu0 0
    %541 = vmatpush1.bf16.msra.mxu0 0
    %542 = vmatprep.subr.bf16.mxu0 0
    %543 = vmatpush1.bf16.msra.mxu0 0
    %544 = vmatprep.subr.bf16.mxu0 0
    %545 = vmatpush1.bf16.msra.mxu0 0
    %546 = vmatprep.subr.bf16.mxu0 0
    %547 = vmatpush1.bf16.msra.mxu0 %v518
    %548 = vmatprep.subr.bf16.mxu0 0
    %549 = vmatpush1.bf16.msra.mxu0 %v517
    %550 = vmatprep.subr.bf16.mxu0 0
    %551 = vmatpush1.bf16.msra.mxu0 %v516
    %552 = vmatprep.subr.bf16.mxu0 0
    %553 = vmatpush2.bf16.msra.mxu0 0
    %554 = vmatprep.subr.bf16.mxu0 0
    %555 = vmatpush2.bf16.msra.mxu0 0
    %556 = vmatprep.subr.bf16.mxu0 0
    %557 = vmatpush2.bf16.msra.mxu0 0
    %558 = vmatprep.subr.bf16.mxu0 0
    %559 = vmatpush2.bf16.msra.mxu0 0
    %560 = vmatprep.subr.bf16.mxu0 0
    %561 = vmatpush2.bf16.msra.mxu0 0
    %562 = vmatprep.subr.bf16.mxu0 0
    %563 = vmatpush2.bf16.msra.mxu0 0
    %564 = vmatprep.subr.bf16.mxu0 0
    %565 = vmatpush2.bf16.msra.mxu0 0
    %566 = vmatprep.subr.bf16.mxu0 0
    %567 = vmatpush2.bf16.msra.mxu0 0
    %568 = vmatprep.mubr.bf16.mxu0 0
    %569 = vmatmul.mubr.bf16.gmra.mxu0 %v531
    %v570 = vpop.f32.mrf.mxu0
    %v571 = vadd.f32 0.0, %v570
    %v572 = vpop.f32.mrf.mxu0
    %v573 = vpop.f32.mrf.mxu0
    %v574 = vadd.f32 0.0, %v573
    %v575 = vpop.f32.mrf.mxu0
    %576 = vmatprep.mubr.bf16.mxu0 0
    %577 = vmatmul.mubr.bf16.gmra.mxu0 %v534
    %v578 = vpop.f32.mrf.mxu0
    %v579 = vadd.f32 0.0, %v578
    %v580 = vpop.f32.mrf.mxu0
    %v581 = vpop.f32.mrf.mxu0
    %v582 = vadd.f32 0.0, %v581
    %v583 = vpop.f32.mrf.mxu0
    %584 = vdwg.mxu0
    %v585 = vld [vmem:[%s1 + $0x40] sm:$0xf]
    %v586 = vld [vmem:[%s1 + $0x44] sm:$0xf]
    %v587 = vld [vmem:[%s1 + $0x48] sm:$0xf]
    %v588 = vld [vmem:[%s1 + $0x4c] sm:$0xf]
    %v589 = vld [vmem:[%s1 + $0x50] sm:$0xf]
    %v590 = vld [vmem:[%s1 + $0x54] sm:$0xf]
    %v591 = vld [vmem:[%s1 + $0x58] sm:$0xf]
    %v592 = vld [vmem:[%s1 + $0x5c] sm:$0xf]
    %v593 = vld [vmem:[%s1 + $0x60] sm:$0xf]
    %v594 = vld [vmem:[%s1 + $0x64] sm:$0xf]
    %v595 = vld [vmem:[%s1 + $0x68] sm:$0xf]
    %v596 = vld [vmem:[%s1 + $0x6c] sm:$0xf]
    %v597 = vpack.c.bf16 %v574, %v571
    %v598 = vpack.c.bf16 %v582, %v579
    %v611 = vunpack.c.l.b16 %v585
    %v612 = vunpack.c.l.b16 %v586
    %v613 = vunpack.c.l.b16 %v587
    %v614 = vunpack.c.l.b16 %v588
    %v615 = vunpack.c.l.b16 %v589
    %v616 = vunpack.c.l.b16 %v590
    %v617 = vunpack.c.l.b16 %v591
    %v618 = vunpack.c.l.b16 %v592
    %v619 = vunpack.c.l.b16 %v593
    %v620 = vunpack.c.l.b16 %v594
    %v621 = vunpack.c.l.b16 %v595
    %v622 = vunpack.c.l.b16 %v596
    %v623 = vpack.c.b16 %v612, %v611
    %v624 = vpack.c.b16 %v614, %v613
    %v625 = vpack.c.b16 %v616, %v615
    %v626 = vpack.c.b16 %v618, %v617
    %v627 = vpack.c.b16 %v620, %v619
    %v628 = vpack.c.b16 %v622, %v621
    %v630 = vsel %vm83, %v623, 0
    %v633 = vsel %vm83, %v624, 0
    %v636 = vsel %vm83, %v625, 0
    %v639 = vsel %vm83, %v626, 0
    %v642 = vsel %vm83, %v627, 0
    %v645 = vsel %vm83, %v628, 0
    %647 = vmatprep.subr.bf16.mxu0 0
    %648 = vmatpush1.bf16.msra.mxu0 0
    %649 = vmatprep.subr.bf16.mxu0 0
    %650 = vmatpush1.bf16.msra.mxu0 0
    %651 = vmatprep.subr.bf16.mxu0 0
    %652 = vmatpush1.bf16.msra.mxu0 0
    %653 = vmatprep.subr.bf16.mxu0 0
    %654 = vmatpush1.bf16.msra.mxu0 0
    %655 = vmatprep.subr.bf16.mxu0 0
    %656 = vmatpush1.bf16.msra.mxu0 0
    %657 = vmatprep.subr.bf16.mxu0 0
    %658 = vmatpush1.bf16.msra.mxu0 0
    %659 = vmatprep.subr.bf16.mxu0 0
    %660 = vmatpush1.bf16.msra.mxu0 %v598
    %661 = vmatprep.subr.bf16.mxu0 0
    %662 = vmatpush1.bf16.msra.mxu0 %v597
    %663 = vmatprep.subr.bf16.mxu0 0
    %664 = vmatpush2.bf16.msra.mxu0 0
    %665 = vmatprep.subr.bf16.mxu0 0
    %666 = vmatpush2.bf16.msra.mxu0 0
    %667 = vmatprep.subr.bf16.mxu0 0
    %668 = vmatpush2.bf16.msra.mxu0 0
    %669 = vmatprep.subr.bf16.mxu0 0
    %670 = vmatpush2.bf16.msra.mxu0 0
    %671 = vmatprep.subr.bf16.mxu0 0
    %672 = vmatpush2.bf16.msra.mxu0 0
    %673 = vmatprep.subr.bf16.mxu0 0
    %674 = vmatpush2.bf16.msra.mxu0 0
    %675 = vmatprep.subr.bf16.mxu0 0
    %676 = vmatpush2.bf16.msra.mxu0 0
    %677 = vmatprep.subr.bf16.mxu0 0
    %678 = vmatpush2.bf16.msra.mxu0 0
    %679 = vmatprep.mubr.bf16.mxu0 0
    %680 = vmatmul.mubr.bf16.gmra.mxu0 %v630
    %v681 = vpop.f32.mrf.mxu0
    %v682 = vadd.f32 0.0, %v681
    %v683 = vpop.f32.mrf.mxu0
    %v684 = vpop.f32.mrf.mxu0
    %v685 = vadd.f32 0.0, %v684
    %v686 = vpop.f32.mrf.mxu0
    %687 = vmatprep.mubr.bf16.mxu0 0
    %688 = vmatmul.mubr.bf16.gmra.mxu0 %v633
    %v689 = vpop.f32.mrf.mxu0
    %v690 = vadd.f32 0.0, %v689
    %v691 = vpop.f32.mrf.mxu0
    %v692 = vpop.f32.mrf.mxu0
    %v693 = vadd.f32 0.0, %v692
    %v694 = vpop.f32.mrf.mxu0
    %695 = vmatprep.mubr.bf16.mxu0 0
    %696 = vmatmul.mubr.bf16.gmra.mxu0 %v636
    %v697 = vpop.f32.mrf.mxu0
    %v698 = vadd.f32 0.0, %v697
    %v699 = vpop.f32.mrf.mxu0
    %v700 = vpop.f32.mrf.mxu0
    %v701 = vadd.f32 0.0, %v700
    %v702 = vpop.f32.mrf.mxu0
    %703 = vmatprep.mubr.bf16.mxu0 0
    %704 = vmatmul.mubr.bf16.gmra.mxu0 %v639
    %v705 = vpop.f32.mrf.mxu0
    %v706 = vadd.f32 0.0, %v705
    %v707 = vpop.f32.mrf.mxu0
    %v708 = vpop.f32.mrf.mxu0
    %v709 = vadd.f32 0.0, %v708
    %v710 = vpop.f32.mrf.mxu0
    %711 = vmatprep.mubr.bf16.mxu0 0
    %712 = vmatmul.mubr.bf16.gmra.mxu0 %v642
    %v713 = vpop.f32.mrf.mxu0
    %v714 = vadd.f32 0.0, %v713
    %v715 = vpop.f32.mrf.mxu0
    %v716 = vpop.f32.mrf.mxu0
    %v717 = vadd.f32 0.0, %v716
    %v718 = vpop.f32.mrf.mxu0
    %719 = vmatprep.mubr.bf16.mxu0 0
    %720 = vmatmul.mubr.bf16.gmra.mxu0 %v645
    %v721 = vpop.f32.mrf.mxu0
    %v722 = vadd.f32 0.0, %v721
    %v723 = vpop.f32.mrf.mxu0
    %v724 = vpop.f32.mrf.mxu0
    %v725 = vadd.f32 0.0, %v724
    %v726 = vpop.f32.mrf.mxu0
    %727 = vdwg.mxu0
    %v728 = vld [vmem:[#allocation2 + $0x68] sm:$0xff]
    %v729 = vld [vmem:[#allocation2 + $0x70] sm:$0xff]
    %v730 = vld [vmem:[#allocation2 + $0x78] sm:$0xff]
    %v731 = vld [vmem:[#allocation2 + $0x80] sm:$0xff]
    %v732 = vpack.c.bf16 %v729, %v728
    %v733 = vpack.c.bf16 %v731, %v730
    %v734 = vld [vmem:[#allocation2 + $0x88] sm:$0xff]
    %v735 = vld [vmem:[#allocation2 + $0x90] sm:$0xff]
    %v736 = vld [vmem:[#allocation2 + $0x98] sm:$0xff]
    %v737 = vld [vmem:[#allocation2 + $0xa0] sm:$0xff]
    %v738 = vpack.c.bf16 %v735, %v734
    %v739 = vpack.c.bf16 %v737, %v736
    %v740 = vpack.c.bf16 %v685, %v682
    %v741 = vpack.c.bf16 %v693, %v690
    %v743 = vsel %vm83, %v740, 0
    %v746 = vsel %vm83, %v741, 0
    %748 = vmatprep.subr.bf16.mxu0 0
    %749 = vmatpush1.bf16.msra.mxu0 0
    %750 = vmatprep.subr.bf16.mxu0 0
    %751 = vmatpush1.bf16.msra.mxu0 0
    %752 = vmatprep.subr.bf16.mxu0 0
    %753 = vmatpush1.bf16.msra.mxu0 0
    %754 = vmatprep.subr.bf16.mxu0 0
    %755 = vmatpush1.bf16.msra.mxu0 0
    %756 = vmatprep.subr.bf16.mxu0 0
    %757 = vmatpush1.bf16.msra.mxu0 0
    %758 = vmatprep.subr.bf16.mxu0 0
    %759 = vmatpush1.bf16.msra.mxu0 0
    %760 = vmatprep.subr.bf16.mxu0 0
    %761 = vmatpush1.bf16.msra.mxu0 %v739
    %762 = vmatprep.subr.bf16.mxu0 0
    %763 = vmatpush1.bf16.msra.mxu0 %v738
    %764 = vmatprep.subr.bf16.mxu0 0
    %765 = vmatpush2.bf16.msra.mxu0 0
    %766 = vmatprep.subr.bf16.mxu0 0
    %767 = vmatpush2.bf16.msra.mxu0 0
    %768 = vmatprep.subr.bf16.mxu0 0
    %769 = vmatpush2.bf16.msra.mxu0 0
    %770 = vmatprep.subr.bf16.mxu0 0
    %771 = vmatpush2.bf16.msra.mxu0 0
    %772 = vmatprep.subr.bf16.mxu0 0
    %773 = vmatpush2.bf16.msra.mxu0 0
    %774 = vmatprep.subr.bf16.mxu0 0
    %775 = vmatpush2.bf16.msra.mxu0 0
    %776 = vmatprep.subr.bf16.mxu0 0
    %777 = vmatpush2.bf16.msra.mxu0 0
    %778 = vmatprep.subr.bf16.mxu0 0
    %779 = vmatpush2.bf16.msra.mxu0 0
    %780 = vmatprep.mubr.bf16.mxu0 0
    %781 = vmatmul.mubr.bf16.gmra.mxu0 %v743
    %v782 = vpop.f32.mrf.mxu0
    %v783 = vadd.f32 0.0, %v782
    %v784 = vpop.f32.mrf.mxu0
    %v785 = vpop.f32.mrf.mxu0
    %v786 = vadd.f32 0.0, %v785
    %v787 = vpop.f32.mrf.mxu0
    %788 = vmatprep.mubr.bf16.mxu0 0
    %789 = vmatmul.mubr.bf16.gmra.mxu0 %v746
    %v790 = vpop.f32.mrf.mxu0
    %v791 = vadd.f32 0.0, %v790
    %v792 = vpop.f32.mrf.mxu0
    %v793 = vpop.f32.mrf.mxu0
    %v794 = vadd.f32 0.0, %v793
    %v795 = vpop.f32.mrf.mxu0
    %796 = vdwg.mxu0
    %v798 = vsel %vm83, %v597, 0
    %v801 = vsel %vm83, %v598, 0
    %803 = vmatprep.subr.bf16.mxu0 0
    %804 = vmatpush1.bf16.msra.mxu0 0
    %805 = vmatprep.subr.bf16.mxu0 0
    %806 = vmatpush1.bf16.msra.mxu0 0
    %807 = vmatprep.subr.bf16.mxu0 0
    %808 = vmatpush1.bf16.msra.mxu0 0
    %809 = vmatprep.subr.bf16.mxu0 0
    %810 = vmatpush1.bf16.msra.mxu0 0
    %811 = vmatprep.subr.bf16.mxu0 0
    %812 = vmatpush1.bf16.msra.mxu0 0
    %813 = vmatprep.subr.bf16.mxu0 0
    %814 = vmatpush1.bf16.msra.mxu0 0
    %815 = vmatprep.subr.bf16.mxu0 0
    %816 = vmatpush1.bf16.msra.mxu0 %v733
    %817 = vmatprep.subr.bf16.mxu0 0
    %818 = vmatpush1.bf16.msra.mxu0 %v732
    %819 = vmatprep.subr.bf16.mxu0 0
    %820 = vmatpush2.bf16.msra.mxu0 0
    %821 = vmatprep.subr.bf16.mxu0 0
    %822 = vmatpush2.bf16.msra.mxu0 0
    %823 = vmatprep.subr.bf16.mxu0 0
    %824 = vmatpush2.bf16.msra.mxu0 0
    %825 = vmatprep.subr.bf16.mxu0 0
    %826 = vmatpush2.bf16.msra.mxu0 0
    %827 = vmatprep.subr.bf16.mxu0 0
    %828 = vmatpush2.bf16.msra.mxu0 0
    %829 = vmatprep.subr.bf16.mxu0 0
    %830 = vmatpush2.bf16.msra.mxu0 0
    %831 = vmatprep.subr.bf16.mxu0 0
    %832 = vmatpush2.bf16.msra.mxu0 0
    %833 = vmatprep.subr.bf16.mxu0 0
    %834 = vmatpush2.bf16.msra.mxu0 0
    %835 = vmatprep.mubr.bf16.mxu0 0
    %836 = vmatmul.mubr.bf16.gmra.mxu0 %v798
    %v837 = vpop.f32.mrf.mxu0
    %v838 = vadd.f32 %v783, %v837
    %v839 = vpop.f32.mrf.mxu0
    %v840 = vpop.f32.mrf.mxu0
    %v841 = vadd.f32 %v786, %v840
    %v842 = vpop.f32.mrf.mxu0
    %843 = vmatprep.mubr.bf16.mxu0 0
    %844 = vmatmul.mubr.bf16.gmra.mxu0 %v801
    %v845 = vpop.f32.mrf.mxu0
    %v846 = vadd.f32 %v791, %v845
    %v847 = vpop.f32.mrf.mxu0
    %v848 = vpop.f32.mrf.mxu0
    %v849 = vadd.f32 %v794, %v848
    %v850 = vpop.f32.mrf.mxu0
    %851 = vdwg.mxu0
    %v852 = vld [vmem:[#allocation2 + $0xa8] sm:$0xff]
    %v853 = vld [vmem:[#allocation2 + $0xb0] sm:$0xff]
    %v854 = vld [vmem:[#allocation2 + $0xb8] sm:$0xff]
    %v855 = vld [vmem:[#allocation2 + $0xc0] sm:$0xff]
    %v856 = vpack.c.bf16 %v853, %v852
    %v857 = vpack.c.bf16 %v855, %v854
    %v858 = vpack.c.bf16 %v701, %v698
    %v859 = vpack.c.bf16 %v709, %v706
    %v861 = vsel %vm83, %v858, 0
    %v864 = vsel %vm83, %v859, 0
    %866 = vmatprep.subr.bf16.mxu0 0
    %867 = vmatpush1.bf16.msra.mxu0 0
    %868 = vmatprep.subr.bf16.mxu0 0
    %869 = vmatpush1.bf16.msra.mxu0 0
    %870 = vmatprep.subr.bf16.mxu0 0
    %871 = vmatpush1.bf16.msra.mxu0 0
    %872 = vmatprep.subr.bf16.mxu0 0
    %873 = vmatpush1.bf16.msra.mxu0 0
    %874 = vmatprep.subr.bf16.mxu0 0
    %875 = vmatpush1.bf16.msra.mxu0 0
    %876 = vmatprep.subr.bf16.mxu0 0
    %877 = vmatpush1.bf16.msra.mxu0 0
    %878 = vmatprep.subr.bf16.mxu0 0
    %879 = vmatpush1.bf16.msra.mxu0 %v857
    %880 = vmatprep.subr.bf16.mxu0 0
    %881 = vmatpush1.bf16.msra.mxu0 %v856
    %882 = vmatprep.subr.bf16.mxu0 0
    %883 = vmatpush2.bf16.msra.mxu0 0
    %884 = vmatprep.subr.bf16.mxu0 0
    %885 = vmatpush2.bf16.msra.mxu0 0
    %886 = vmatprep.subr.bf16.mxu0 0
    %887 = vmatpush2.bf16.msra.mxu0 0
    %888 = vmatprep.subr.bf16.mxu0 0
    %889 = vmatpush2.bf16.msra.mxu0 0
    %890 = vmatprep.subr.bf16.mxu0 0
    %891 = vmatpush2.bf16.msra.mxu0 0
    %892 = vmatprep.subr.bf16.mxu0 0
    %893 = vmatpush2.bf16.msra.mxu0 0
    %894 = vmatprep.subr.bf16.mxu0 0
    %895 = vmatpush2.bf16.msra.mxu0 0
    %896 = vmatprep.subr.bf16.mxu0 0
    %897 = vmatpush2.bf16.msra.mxu0 0
    %898 = vmatprep.mubr.bf16.mxu0 0
    %899 = vmatmul.mubr.bf16.gmra.mxu0 %v861
    %v900 = vpop.f32.mrf.mxu0
    %v901 = vadd.f32 0.0, %v900
    %v902 = vpop.f32.mrf.mxu0
    %v903 = vpop.f32.mrf.mxu0
    %v904 = vadd.f32 0.0, %v903
    %v905 = vpop.f32.mrf.mxu0
    %906 = vmatprep.mubr.bf16.mxu0 0
    %907 = vmatmul.mubr.bf16.gmra.mxu0 %v864
    %v908 = vpop.f32.mrf.mxu0
    %v909 = vadd.f32 0.0, %v908
    %v910 = vpop.f32.mrf.mxu0
    %v911 = vpop.f32.mrf.mxu0
    %v912 = vadd.f32 0.0, %v911
    %v913 = vpop.f32.mrf.mxu0
    %914 = vdwg.mxu0
    %v915 = vadd.f32 %v838, %v901
    %v916 = vadd.f32 %v841, %v904
    %v917 = vadd.f32 %v846, %v909
    %v918 = vadd.f32 %v849, %v912
    %v919 = vld [vmem:[#allocation2 + $0xc8] sm:$0xff]
    %v920 = vld [vmem:[#allocation2 + $0xd0] sm:$0xff]
    %v921 = vld [vmem:[#allocation2 + $0xd8] sm:$0xff]
    %v922 = vld [vmem:[#allocation2 + $0xe0] sm:$0xff]
    %v923 = vpack.c.bf16 %v920, %v919
    %v924 = vpack.c.bf16 %v922, %v921
    %v925 = vpack.c.bf16 %v717, %v714
    %v926 = vpack.c.bf16 %v725, %v722
    %v928 = vsel %vm83, %v925, 0
    %v931 = vsel %vm83, %v926, 0
    %933 = vmatprep.subr.bf16.mxu0 0
    %934 = vmatpush1.bf16.msra.mxu0 0
    %935 = vmatprep.subr.bf16.mxu0 0
    %936 = vmatpush1.bf16.msra.mxu0 0
    %937 = vmatprep.subr.bf16.mxu0 0
    %938 = vmatpush1.bf16.msra.mxu0 0
    %939 = vmatprep.subr.bf16.mxu0 0
    %940 = vmatpush1.bf16.msra.mxu0 0
    %941 = vmatprep.subr.bf16.mxu0 0
    %942 = vmatpush1.bf16.msra.mxu0 0
    %943 = vmatprep.subr.bf16.mxu0 0
    %944 = vmatpush1.bf16.msra.mxu0 0
    %945 = vmatprep.subr.bf16.mxu0 0
    %946 = vmatpush1.bf16.msra.mxu0 %v924
    %947 = vmatprep.subr.bf16.mxu0 0
    %948 = vmatpush1.bf16.msra.mxu0 %v923
    %949 = vmatprep.subr.bf16.mxu0 0
    %950 = vmatpush2.bf16.msra.mxu0 0
    %951 = vmatprep.subr.bf16.mxu0 0
    %952 = vmatpush2.bf16.msra.mxu0 0
    %953 = vmatprep.subr.bf16.mxu0 0
    %954 = vmatpush2.bf16.msra.mxu0 0
    %955 = vmatprep.subr.bf16.mxu0 0
    %956 = vmatpush2.bf16.msra.mxu0 0
    %957 = vmatprep.subr.bf16.mxu0 0
    %958 = vmatpush2.bf16.msra.mxu0 0
    %959 = vmatprep.subr.bf16.mxu0 0
    %960 = vmatpush2.bf16.msra.mxu0 0
    %961 = vmatprep.subr.bf16.mxu0 0
    %962 = vmatpush2.bf16.msra.mxu0 0
    %963 = vmatprep.subr.bf16.mxu0 0
    %964 = vmatpush2.bf16.msra.mxu0 0
    %965 = vmatprep.mubr.bf16.mxu0 0
    %966 = vmatmul.mubr.bf16.gmra.mxu0 %v928
    %v967 = vpop.f32.mrf.mxu0
    %v968 = vadd.f32 0.0, %v967
    %v969 = vpop.f32.mrf.mxu0
    %v970 = vpop.f32.mrf.mxu0
    %v971 = vadd.f32 0.0, %v970
    %v972 = vpop.f32.mrf.mxu0
    %973 = vmatprep.mubr.bf16.mxu0 0
    %974 = vmatmul.mubr.bf16.gmra.mxu0 %v931
    %v975 = vpop.f32.mrf.mxu0
    %v976 = vadd.f32 0.0, %v975
    %v977 = vpop.f32.mrf.mxu0
    %v978 = vpop.f32.mrf.mxu0
    %v979 = vadd.f32 0.0, %v978
    %v980 = vpop.f32.mrf.mxu0
    %981 = vdwg.mxu0
    %v982 = vadd.f32 %v915, %v968
    %v983 = vadd.f32 %v916, %v971
    %v984 = vadd.f32 %v917, %v976
    %v985 = vadd.f32 %v918, %v979
    %v986 = vld [vmem:[#allocation2 + $0x1f8] sm:$0x1]
    %v987 = vlaneseq
    %v988 = vshrl.u32 %v987, 7
    %v989 = vsub.s32 0, %v988
    %v990 = vrot.slane %v986, %v989
    %v991 = vadd.f32 %v982, %v990
    %v992 = vadd.f32 %v983, %v990
    %v993 = vadd.f32 %v984, %v990
    %v994 = vadd.f32 %v985, %v990
    %v995 = vmax.f32 %v991, 0.0
    %v996 = vmax.f32 %v992, 0.0
    %v997 = vmax.f32 %v993, 0.0
    %v998 = vmax.f32 %v994, 0.0
    %v999 = vpack.c.bf16 %v996, %v995
    %v1000 = vpack.c.bf16 %v998, %v997
    %1001 = vmatprep.subr.bf16.mxu0 0
    %1002 = vmatpush1.bf16.msra.mxu0 0
    %1003 = vmatprep.subr.bf16.mxu0 0
    %1004 = vmatpush1.bf16.msra.mxu0 0
    %1005 = vmatprep.subr.bf16.mxu0 0
    %1006 = vmatpush1.bf16.msra.mxu0 0
    %1007 = vmatprep.subr.bf16.mxu0 0
    %1008 = vmatpush1.bf16.msra.mxu0 0
    %1009 = vmatprep.subr.bf16.mxu0 0
    %1010 = vmatpush1.bf16.msra.mxu0 0
    %1011 = vmatprep.subr.bf16.mxu0 0
    %1012 = vmatpush1.bf16.msra.mxu0 0
    %1013 = vmatprep.subr.bf16.mxu0 0
    %1014 = vmatpush1.bf16.msra.mxu0 %v1000
    %1015 = vmatprep.subr.bf16.mxu0 0
    %1016 = vmatpush1.bf16.msra.mxu0 %v999
    %1017 = vmatprep.subr.bf16.mxu0 0
    %1018 = vmatpush2.bf16.msra.mxu0 0
    %1019 = vmatprep.subr.bf16.mxu0 0
    %1020 = vmatpush2.bf16.msra.mxu0 0
    %1021 = vmatprep.subr.bf16.mxu0 0
    %1022 = vmatpush2.bf16.msra.mxu0 0
    %1023 = vmatprep.subr.bf16.mxu0 0
    %1024 = vmatpush2.bf16.msra.mxu0 0
    %1025 = vmatprep.subr.bf16.mxu0 0
    %1026 = vmatpush2.bf16.msra.mxu0 0
    %1027 = vmatprep.subr.bf16.mxu0 0
    %1028 = vmatpush2.bf16.msra.mxu0 0
    %1029 = vmatprep.subr.bf16.mxu0 0
    %1030 = vmatpush2.bf16.msra.mxu0 0
    %1031 = vmatprep.subr.bf16.mxu0 0
    %1032 = vmatpush2.bf16.msra.mxu0 0
    %1033 = vmatprep.mubr.bf16.mxu0 0
    %1034 = vmatmul.mubr.bf16.gmra.mxu0 %v630
    %v1035 = vpop.f32.mrf.mxu0
    %v1036 = vadd.f32 0.0, %v1035
    %v1037 = vpop.f32.mrf.mxu0
    %v1038 = vpop.f32.mrf.mxu0
    %v1039 = vadd.f32 0.0, %v1038
    %v1040 = vpop.f32.mrf.mxu0
    %1041 = vmatprep.mubr.bf16.mxu0 0
    %1042 = vmatmul.mubr.bf16.gmra.mxu0 %v633
    %v1043 = vpop.f32.mrf.mxu0
    %v1044 = vadd.f32 0.0, %v1043
    %v1045 = vpop.f32.mrf.mxu0
    %v1046 = vpop.f32.mrf.mxu0
    %v1047 = vadd.f32 0.0, %v1046
    %v1048 = vpop.f32.mrf.mxu0
    %1049 = vmatprep.mubr.bf16.mxu0 0
    %1050 = vmatmul.mubr.bf16.gmra.mxu0 %v636
    %v1051 = vpop.f32.mrf.mxu0
    %v1052 = vadd.f32 0.0, %v1051
    %v1053 = vpop.f32.mrf.mxu0
    %v1054 = vpop.f32.mrf.mxu0
    %v1055 = vadd.f32 0.0, %v1054
    %v1056 = vpop.f32.mrf.mxu0
    %1057 = vmatprep.mubr.bf16.mxu0 0
    %1058 = vmatmul.mubr.bf16.gmra.mxu0 %v639
    %v1059 = vpop.f32.mrf.mxu0
    %v1060 = vadd.f32 0.0, %v1059
    %v1061 = vpop.f32.mrf.mxu0
    %v1062 = vpop.f32.mrf.mxu0
    %v1063 = vadd.f32 0.0, %v1062
    %v1064 = vpop.f32.mrf.mxu0
    %1065 = vmatprep.mubr.bf16.mxu0 0
    %1066 = vmatmul.mubr.bf16.gmra.mxu0 %v642
    %v1067 = vpop.f32.mrf.mxu0
    %v1068 = vadd.f32 0.0, %v1067
    %v1069 = vpop.f32.mrf.mxu0
    %v1070 = vpop.f32.mrf.mxu0
    %v1071 = vadd.f32 0.0, %v1070
    %v1072 = vpop.f32.mrf.mxu0
    %1073 = vmatprep.mubr.bf16.mxu0 0
    %1074 = vmatmul.mubr.bf16.gmra.mxu0 %v645
    %v1075 = vpop.f32.mrf.mxu0
    %v1076 = vadd.f32 0.0, %v1075
    %v1077 = vpop.f32.mrf.mxu0
    %v1078 = vpop.f32.mrf.mxu0
    %v1079 = vadd.f32 0.0, %v1078
    %v1080 = vpop.f32.mrf.mxu0
    %1081 = vdwg.mxu0
    %v1082 = vld [vmem:[#allocation2 + $0xe8] sm:$0xff]
    %v1083 = vld [vmem:[#allocation2 + $0xf0] sm:$0xff]
    %v1084 = vld [vmem:[#allocation2 + $0xf8] sm:$0xff]
    %v1085 = vld [vmem:[#allocation2 + $0x100] sm:$0xff]
    %v1086 = vpack.c.bf16 %v1083, %v1082
    %v1087 = vpack.c.bf16 %v1085, %v1084
    %v1088 = vld [vmem:[#allocation2 + $0x108] sm:$0xff]
    %v1089 = vld [vmem:[#allocation2 + $0x110] sm:$0xff]
    %v1090 = vld [vmem:[#allocation2 + $0x118] sm:$0xff]
    %v1091 = vld [vmem:[#allocation2 + $0x120] sm:$0xff]
    %v1092 = vpack.c.bf16 %v1089, %v1088
    %v1093 = vpack.c.bf16 %v1091, %v1090
    %v1094 = vpack.c.bf16 %v1039, %v1036
    %v1095 = vpack.c.bf16 %v1047, %v1044
    %v1097 = vsel %vm83, %v1094, 0
    %v1100 = vsel %vm83, %v1095, 0
    %1102 = vmatprep.subr.bf16.mxu0 0
    %1103 = vmatpush1.bf16.msra.mxu0 0
    %1104 = vmatprep.subr.bf16.mxu0 0
    %1105 = vmatpush1.bf16.msra.mxu0 0
    %1106 = vmatprep.subr.bf16.mxu0 0
    %1107 = vmatpush1.bf16.msra.mxu0 0
    %1108 = vmatprep.subr.bf16.mxu0 0
    %1109 = vmatpush1.bf16.msra.mxu0 0
    %1110 = vmatprep.subr.bf16.mxu0 0
    %1111 = vmatpush1.bf16.msra.mxu0 0
    %1112 = vmatprep.subr.bf16.mxu0 0
    %1113 = vmatpush1.bf16.msra.mxu0 0
    %1114 = vmatprep.subr.bf16.mxu0 0
    %1115 = vmatpush1.bf16.msra.mxu0 %v1093
    %1116 = vmatprep.subr.bf16.mxu0 0
    %1117 = vmatpush1.bf16.msra.mxu0 %v1092
    %1118 = vmatprep.subr.bf16.mxu0 0
    %1119 = vmatpush2.bf16.msra.mxu0 0
    %1120 = vmatprep.subr.bf16.mxu0 0
    %1121 = vmatpush2.bf16.msra.mxu0 0
    %1122 = vmatprep.subr.bf16.mxu0 0
    %1123 = vmatpush2.bf16.msra.mxu0 0
    %1124 = vmatprep.subr.bf16.mxu0 0
    %1125 = vmatpush2.bf16.msra.mxu0 0
    %1126 = vmatprep.subr.bf16.mxu0 0
    %1127 = vmatpush2.bf16.msra.mxu0 0
    %1128 = vmatprep.subr.bf16.mxu0 0
    %1129 = vmatpush2.bf16.msra.mxu0 0
    %1130 = vmatprep.subr.bf16.mxu0 0
    %1131 = vmatpush2.bf16.msra.mxu0 0
    %1132 = vmatprep.subr.bf16.mxu0 0
    %1133 = vmatpush2.bf16.msra.mxu0 0
    %1134 = vmatprep.mubr.bf16.mxu0 0
    %1135 = vmatmul.mubr.bf16.gmra.mxu0 %v1097
    %v1136 = vpop.f32.mrf.mxu0
    %v1137 = vadd.f32 0.0, %v1136
    %v1138 = vpop.f32.mrf.mxu0
    %v1139 = vpop.f32.mrf.mxu0
    %v1140 = vadd.f32 0.0, %v1139
    %v1141 = vpop.f32.mrf.mxu0
    %1142 = vmatprep.mubr.bf16.mxu0 0
    %1143 = vmatmul.mubr.bf16.gmra.mxu0 %v1100
    %v1144 = vpop.f32.mrf.mxu0
    %v1145 = vadd.f32 0.0, %v1144
    %v1146 = vpop.f32.mrf.mxu0
    %v1147 = vpop.f32.mrf.mxu0
    %v1148 = vadd.f32 0.0, %v1147
    %v1149 = vpop.f32.mrf.mxu0
    %1150 = vdwg.mxu0
    %v1152 = vsel %vm83, %v999, 0
    %v1155 = vsel %vm83, %v1000, 0
    %1157 = vmatprep.subr.bf16.mxu0 0
    %1158 = vmatpush1.bf16.msra.mxu0 0
    %1159 = vmatprep.subr.bf16.mxu0 0
    %1160 = vmatpush1.bf16.msra.mxu0 0
    %1161 = vmatprep.subr.bf16.mxu0 0
    %1162 = vmatpush1.bf16.msra.mxu0 0
    %1163 = vmatprep.subr.bf16.mxu0 0
    %1164 = vmatpush1.bf16.msra.mxu0 0
    %1165 = vmatprep.subr.bf16.mxu0 0
    %1166 = vmatpush1.bf16.msra.mxu0 0
    %1167 = vmatprep.subr.bf16.mxu0 0
    %1168 = vmatpush1.bf16.msra.mxu0 0
    %1169 = vmatprep.subr.bf16.mxu0 0
    %1170 = vmatpush1.bf16.msra.mxu0 %v1087
    %1171 = vmatprep.subr.bf16.mxu0 0
    %1172 = vmatpush1.bf16.msra.mxu0 %v1086
    %1173 = vmatprep.subr.bf16.mxu0 0
    %1174 = vmatpush2.bf16.msra.mxu0 0
    %1175 = vmatprep.subr.bf16.mxu0 0
    %1176 = vmatpush2.bf16.msra.mxu0 0
    %1177 = vmatprep.subr.bf16.mxu0 0
    %1178 = vmatpush2.bf16.msra.mxu0 0
    %1179 = vmatprep.subr.bf16.mxu0 0
    %1180 = vmatpush2.bf16.msra.mxu0 0
    %1181 = vmatprep.subr.bf16.mxu0 0
    %1182 = vmatpush2.bf16.msra.mxu0 0
    %1183 = vmatprep.subr.bf16.mxu0 0
    %1184 = vmatpush2.bf16.msra.mxu0 0
    %1185 = vmatprep.subr.bf16.mxu0 0
    %1186 = vmatpush2.bf16.msra.mxu0 0
    %1187 = vmatprep.subr.bf16.mxu0 0
    %1188 = vmatpush2.bf16.msra.mxu0 0
    %1189 = vmatprep.mubr.bf16.mxu0 0
    %1190 = vmatmul.mubr.bf16.gmra.mxu0 %v1152
    %v1191 = vpop.f32.mrf.mxu0
    %v1192 = vadd.f32 %v1137, %v1191
    %v1193 = vpop.f32.mrf.mxu0
    %v1194 = vpop.f32.mrf.mxu0
    %v1195 = vadd.f32 %v1140, %v1194
    %v1196 = vpop.f32.mrf.mxu0
    %1197 = vmatprep.mubr.bf16.mxu0 0
    %1198 = vmatmul.mubr.bf16.gmra.mxu0 %v1155
    %v1199 = vpop.f32.mrf.mxu0
    %v1200 = vadd.f32 %v1145, %v1199
    %v1201 = vpop.f32.mrf.mxu0
    %v1202 = vpop.f32.mrf.mxu0
    %v1203 = vadd.f32 %v1148, %v1202
    %v1204 = vpop.f32.mrf.mxu0
    %1205 = vdwg.mxu0
    %v1206 = vld [vmem:[#allocation2 + $0x128] sm:$0xff]
    %v1207 = vld [vmem:[#allocation2 + $0x130] sm:$0xff]
    %v1208 = vld [vmem:[#allocation2 + $0x138] sm:$0xff]
    %v1209 = vld [vmem:[#allocation2 + $0x140] sm:$0xff]
    %v1210 = vpack.c.bf16 %v1207, %v1206
    %v1211 = vpack.c.bf16 %v1209, %v1208
    %v1212 = vpack.c.bf16 %v1055, %v1052
    %v1213 = vpack.c.bf16 %v1063, %v1060
    %v1215 = vsel %vm83, %v1212, 0
    %v1218 = vsel %vm83, %v1213, 0
    %1220 = vmatprep.subr.bf16.mxu0 0
    %1221 = vmatpush1.bf16.msra.mxu0 0
    %1222 = vmatprep.subr.bf16.mxu0 0
    %1223 = vmatpush1.bf16.msra.mxu0 0
    %1224 = vmatprep.subr.bf16.mxu0 0
    %1225 = vmatpush1.bf16.msra.mxu0 0
    %1226 = vmatprep.subr.bf16.mxu0 0
    %1227 = vmatpush1.bf16.msra.mxu0 0
    %1228 = vmatprep.subr.bf16.mxu0 0
    %1229 = vmatpush1.bf16.msra.mxu0 0
    %1230 = vmatprep.subr.bf16.mxu0 0
    %1231 = vmatpush1.bf16.msra.mxu0 0
    %1232 = vmatprep.subr.bf16.mxu0 0
    %1233 = vmatpush1.bf16.msra.mxu0 %v1211
    %1234 = vmatprep.subr.bf16.mxu0 0
    %1235 = vmatpush1.bf16.msra.mxu0 %v1210
    %1236 = vmatprep.subr.bf16.mxu0 0
    %1237 = vmatpush2.bf16.msra.mxu0 0
    %1238 = vmatprep.subr.bf16.mxu0 0
    %1239 = vmatpush2.bf16.msra.mxu0 0
    %1240 = vmatprep.subr.bf16.mxu0 0
    %1241 = vmatpush2.bf16.msra.mxu0 0
    %1242 = vmatprep.subr.bf16.mxu0 0
    %1243 = vmatpush2.bf16.msra.mxu0 0
    %1244 = vmatprep.subr.bf16.mxu0 0
    %1245 = vmatpush2.bf16.msra.mxu0 0
    %1246 = vmatprep.subr.bf16.mxu0 0
    %1247 = vmatpush2.bf16.msra.mxu0 0
    %1248 = vmatprep.subr.bf16.mxu0 0
    %1249 = vmatpush2.bf16.msra.mxu0 0
    %1250 = vmatprep.subr.bf16.mxu0 0
    %1251 = vmatpush2.bf16.msra.mxu0 0
    %1252 = vmatprep.mubr.bf16.mxu0 0
    %1253 = vmatmul.mubr.bf16.gmra.mxu0 %v1215
    %v1254 = vpop.f32.mrf.mxu0
    %v1255 = vadd.f32 0.0, %v1254
    %v1256 = vpop.f32.mrf.mxu0
    %v1257 = vpop.f32.mrf.mxu0
    %v1258 = vadd.f32 0.0, %v1257
    %v1259 = vpop.f32.mrf.mxu0
    %1260 = vmatprep.mubr.bf16.mxu0 0
    %1261 = vmatmul.mubr.bf16.gmra.mxu0 %v1218
    %v1262 = vpop.f32.mrf.mxu0
    %v1263 = vadd.f32 0.0, %v1262
    %v1264 = vpop.f32.mrf.mxu0
    %v1265 = vpop.f32.mrf.mxu0
    %v1266 = vadd.f32 0.0, %v1265
    %v1267 = vpop.f32.mrf.mxu0
    %1268 = vdwg.mxu0
    %v1269 = vadd.f32 %v1192, %v1255
    %v1270 = vadd.f32 %v1195, %v1258
    %v1271 = vadd.f32 %v1200, %v1263
    %v1272 = vadd.f32 %v1203, %v1266
    %v1273 = vld [vmem:[#allocation2 + $0x148] sm:$0xff]
    %v1274 = vld [vmem:[#allocation2 + $0x150] sm:$0xff]
    %v1275 = vld [vmem:[#allocation2 + $0x158] sm:$0xff]
    %v1276 = vld [vmem:[#allocation2 + $0x160] sm:$0xff]
    %v1277 = vpack.c.bf16 %v1274, %v1273
    %v1278 = vpack.c.bf16 %v1276, %v1275
    %v1279 = vpack.c.bf16 %v1071, %v1068
    %v1280 = vpack.c.bf16 %v1079, %v1076
    %v1282 = vsel %vm83, %v1279, 0
    %v1285 = vsel %vm83, %v1280, 0
    %1287 = vmatprep.subr.bf16.mxu0 0
    %1288 = vmatpush1.bf16.msra.mxu0 0
    %1289 = vmatprep.subr.bf16.mxu0 0
    %1290 = vmatpush1.bf16.msra.mxu0 0
    %1291 = vmatprep.subr.bf16.mxu0 0
    %1292 = vmatpush1.bf16.msra.mxu0 0
    %1293 = vmatprep.subr.bf16.mxu0 0
    %1294 = vmatpush1.bf16.msra.mxu0 0
    %1295 = vmatprep.subr.bf16.mxu0 0
    %1296 = vmatpush1.bf16.msra.mxu0 0
    %1297 = vmatprep.subr.bf16.mxu0 0
    %1298 = vmatpush1.bf16.msra.mxu0 0
    %1299 = vmatprep.subr.bf16.mxu0 0
    %1300 = vmatpush1.bf16.msra.mxu0 %v1278
    %1301 = vmatprep.subr.bf16.mxu0 0
    %1302 = vmatpush1.bf16.msra.mxu0 %v1277
    %1303 = vmatprep.subr.bf16.mxu0 0
    %1304 = vmatpush2.bf16.msra.mxu0 0
    %1305 = vmatprep.subr.bf16.mxu0 0
    %1306 = vmatpush2.bf16.msra.mxu0 0
    %1307 = vmatprep.subr.bf16.mxu0 0
    %1308 = vmatpush2.bf16.msra.mxu0 0
    %1309 = vmatprep.subr.bf16.mxu0 0
    %1310 = vmatpush2.bf16.msra.mxu0 0
    %1311 = vmatprep.subr.bf16.mxu0 0
    %1312 = vmatpush2.bf16.msra.mxu0 0
    %1313 = vmatprep.subr.bf16.mxu0 0
    %1314 = vmatpush2.bf16.msra.mxu0 0
    %1315 = vmatprep.subr.bf16.mxu0 0
    %1316 = vmatpush2.bf16.msra.mxu0 0
    %1317 = vmatprep.subr.bf16.mxu0 0
    %1318 = vmatpush2.bf16.msra.mxu0 0
    %1319 = vmatprep.mubr.bf16.mxu0 0
    %1320 = vmatmul.mubr.bf16.gmra.mxu0 %v1282
    %v1321 = vpop.f32.mrf.mxu0
    %v1322 = vadd.f32 0.0, %v1321
    %v1323 = vpop.f32.mrf.mxu0
    %v1324 = vpop.f32.mrf.mxu0
    %v1325 = vadd.f32 0.0, %v1324
    %v1326 = vpop.f32.mrf.mxu0
    %1327 = vmatprep.mubr.bf16.mxu0 0
    %1328 = vmatmul.mubr.bf16.gmra.mxu0 %v1285
    %v1329 = vpop.f32.mrf.mxu0
    %v1330 = vadd.f32 0.0, %v1329
    %v1331 = vpop.f32.mrf.mxu0
    %v1332 = vpop.f32.mrf.mxu0
    %v1333 = vadd.f32 0.0, %v1332
    %v1334 = vpop.f32.mrf.mxu0
    %1335 = vdwg.mxu0
    %v1336 = vadd.f32 %v1269, %v1322
    %v1337 = vadd.f32 %v1270, %v1325
    %v1338 = vadd.f32 %v1271, %v1330
    %v1339 = vadd.f32 %v1272, %v1333
    %v1340 = vld [vmem:[#allocation2 + $0x200] sm:$0x1]
    %v1341 = vlaneseq
    %v1342 = vshrl.u32 %v1341, 7
    %v1343 = vsub.s32 0, %v1342
    %v1344 = vrot.slane %v1340, %v1343
    %v1345 = vadd.f32 %v1336, %v1344
    %v1346 = vadd.f32 %v1337, %v1344
    %v1347 = vadd.f32 %v1338, %v1344
    %v1348 = vadd.f32 %v1339, %v1344
    %v1349 = vmax.f32 %v1345, 0.0
    %v1350 = vmax.f32 %v1346, 0.0
    %v1351 = vmax.f32 %v1347, 0.0
    %v1352 = vmax.f32 %v1348, 0.0
    %v1353 = vpack.c.bf16 %v1350, %v1349
    %v1354 = vpack.c.bf16 %v1352, %v1351
    %1355 = vmatprep.subr.bf16.mxu0 0
    %1356 = vmatpush1.bf16.msra.mxu0 0
    %1357 = vmatprep.subr.bf16.mxu0 0
    %1358 = vmatpush1.bf16.msra.mxu0 0
    %1359 = vmatprep.subr.bf16.mxu0 0
    %1360 = vmatpush1.bf16.msra.mxu0 0
    %1361 = vmatprep.subr.bf16.mxu0 0
    %1362 = vmatpush1.bf16.msra.mxu0 0
    %1363 = vmatprep.subr.bf16.mxu0 0
    %1364 = vmatpush1.bf16.msra.mxu0 0
    %1365 = vmatprep.subr.bf16.mxu0 0
    %1366 = vmatpush1.bf16.msra.mxu0 0
    %1367 = vmatprep.subr.bf16.mxu0 0
    %1368 = vmatpush1.bf16.msra.mxu0 %v1354
    %1369 = vmatprep.subr.bf16.mxu0 0
    %1370 = vmatpush1.bf16.msra.mxu0 %v1353
    %1371 = vmatprep.subr.bf16.mxu0 0
    %1372 = vmatpush2.bf16.msra.mxu0 0
    %1373 = vmatprep.subr.bf16.mxu0 0
    %1374 = vmatpush2.bf16.msra.mxu0 0
    %1375 = vmatprep.subr.bf16.mxu0 0
    %1376 = vmatpush2.bf16.msra.mxu0 0
    %1377 = vmatprep.subr.bf16.mxu0 0
    %1378 = vmatpush2.bf16.msra.mxu0 0
    %1379 = vmatprep.subr.bf16.mxu0 0
    %1380 = vmatpush2.bf16.msra.mxu0 0
    %1381 = vmatprep.subr.bf16.mxu0 0
    %1382 = vmatpush2.bf16.msra.mxu0 0
    %1383 = vmatprep.subr.bf16.mxu0 0
    %1384 = vmatpush2.bf16.msra.mxu0 0
    %1385 = vmatprep.subr.bf16.mxu0 0
    %1386 = vmatpush2.bf16.msra.mxu0 0
    %1387 = vmatprep.mubr.bf16.mxu0 0
    %1388 = vmatmul.mubr.bf16.gmra.mxu0 %v630
    %v1389 = vpop.f32.mrf.mxu0
    %v1390 = vadd.f32 0.0, %v1389
    %v1391 = vpop.f32.mrf.mxu0
    %v1392 = vpop.f32.mrf.mxu0
    %v1393 = vadd.f32 0.0, %v1392
    %v1394 = vpop.f32.mrf.mxu0
    %1395 = vmatprep.mubr.bf16.mxu0 0
    %1396 = vmatmul.mubr.bf16.gmra.mxu0 %v633
    %v1397 = vpop.f32.mrf.mxu0
    %v1398 = vadd.f32 0.0, %v1397
    %v1399 = vpop.f32.mrf.mxu0
    %v1400 = vpop.f32.mrf.mxu0
    %v1401 = vadd.f32 0.0, %v1400
    %v1402 = vpop.f32.mrf.mxu0
    %1403 = vmatprep.mubr.bf16.mxu0 0
    %1404 = vmatmul.mubr.bf16.gmra.mxu0 %v636
    %v1405 = vpop.f32.mrf.mxu0
    %v1406 = vadd.f32 0.0, %v1405
    %v1407 = vpop.f32.mrf.mxu0
    %v1408 = vpop.f32.mrf.mxu0
    %v1409 = vadd.f32 0.0, %v1408
    %v1410 = vpop.f32.mrf.mxu0
    %1411 = vmatprep.mubr.bf16.mxu0 0
    %1412 = vmatmul.mubr.bf16.gmra.mxu0 %v639
    %v1413 = vpop.f32.mrf.mxu0
    %v1414 = vadd.f32 0.0, %v1413
    %v1415 = vpop.f32.mrf.mxu0
    %v1416 = vpop.f32.mrf.mxu0
    %v1417 = vadd.f32 0.0, %v1416
    %v1418 = vpop.f32.mrf.mxu0
    %1419 = vmatprep.mubr.bf16.mxu0 0
    %1420 = vmatmul.mubr.bf16.gmra.mxu0 %v642
    %v1421 = vpop.f32.mrf.mxu0
    %v1422 = vadd.f32 0.0, %v1421
    %v1423 = vpop.f32.mrf.mxu0
    %v1424 = vpop.f32.mrf.mxu0
    %v1425 = vadd.f32 0.0, %v1424
    %v1426 = vpop.f32.mrf.mxu0
    %1427 = vmatprep.mubr.bf16.mxu0 0
    %1428 = vmatmul.mubr.bf16.gmra.mxu0 %v645
    %v1429 = vpop.f32.mrf.mxu0
    %v1430 = vadd.f32 0.0, %v1429
    %v1431 = vpop.f32.mrf.mxu0
    %v1432 = vpop.f32.mrf.mxu0
    %v1433 = vadd.f32 0.0, %v1432
    %v1434 = vpop.f32.mrf.mxu0
    %1435 = vdwg.mxu0
    %v1436 = vld [vmem:[#allocation2 + $0x168] sm:$0xff]
    %v1437 = vld [vmem:[#allocation2 + $0x170] sm:$0xff]
    %v1438 = vld [vmem:[#allocation2 + $0x178] sm:$0xff]
    %v1439 = vld [vmem:[#allocation2 + $0x180] sm:$0xff]
    %v1440 = vpack.c.bf16 %v1437, %v1436
    %v1441 = vpack.c.bf16 %v1439, %v1438
    %v1442 = vld [vmem:[#allocation2 + $0x188] sm:$0xff]
    %v1443 = vld [vmem:[#allocation2 + $0x190] sm:$0xff]
    %v1444 = vld [vmem:[#allocation2 + $0x198] sm:$0xff]
    %v1445 = vld [vmem:[#allocation2 + $0x1a0] sm:$0xff]
    %v1446 = vpack.c.bf16 %v1443, %v1442
    %v1447 = vpack.c.bf16 %v1445, %v1444
    %v1448 = vpack.c.bf16 %v1393, %v1390
    %v1449 = vpack.c.bf16 %v1401, %v1398
    %v1451 = vsel %vm83, %v1448, 0
    %v1454 = vsel %vm83, %v1449, 0
    %1456 = vmatprep.subr.bf16.mxu0 0
    %1457 = vmatpush1.bf16.msra.mxu0 0
    %1458 = vmatprep.subr.bf16.mxu0 0
    %1459 = vmatpush1.bf16.msra.mxu0 0
    %1460 = vmatprep.subr.bf16.mxu0 0
    %1461 = vmatpush1.bf16.msra.mxu0 0
    %1462 = vmatprep.subr.bf16.mxu0 0
    %1463 = vmatpush1.bf16.msra.mxu0 0
    %1464 = vmatprep.subr.bf16.mxu0 0
    %1465 = vmatpush1.bf16.msra.mxu0 0
    %1466 = vmatprep.subr.bf16.mxu0 0
    %1467 = vmatpush1.bf16.msra.mxu0 0
    %1468 = vmatprep.subr.bf16.mxu0 0
    %1469 = vmatpush1.bf16.msra.mxu0 %v1447
    %1470 = vmatprep.subr.bf16.mxu0 0
    %1471 = vmatpush1.bf16.msra.mxu0 %v1446
    %1472 = vmatprep.subr.bf16.mxu0 0
    %1473 = vmatpush2.bf16.msra.mxu0 0
    %1474 = vmatprep.subr.bf16.mxu0 0
    %1475 = vmatpush2.bf16.msra.mxu0 0
    %1476 = vmatprep.subr.bf16.mxu0 0
    %1477 = vmatpush2.bf16.msra.mxu0 0
    %1478 = vmatprep.subr.bf16.mxu0 0
    %1479 = vmatpush2.bf16.msra.mxu0 0
    %1480 = vmatprep.subr.bf16.mxu0 0
    %1481 = vmatpush2.bf16.msra.mxu0 0
    %1482 = vmatprep.subr.bf16.mxu0 0
    %1483 = vmatpush2.bf16.msra.mxu0 0
    %1484 = vmatprep.subr.bf16.mxu0 0
    %1485 = vmatpush2.bf16.msra.mxu0 0
    %1486 = vmatprep.subr.bf16.mxu0 0
    %1487 = vmatpush2.bf16.msra.mxu0 0
    %1488 = vmatprep.mubr.bf16.mxu0 0
    %1489 = vmatmul.mubr.bf16.gmra.mxu0 %v1451
    %v1490 = vpop.f32.mrf.mxu0
    %v1491 = vadd.f32 0.0, %v1490
    %v1492 = vpop.f32.mrf.mxu0
    %v1493 = vpop.f32.mrf.mxu0
    %v1494 = vadd.f32 0.0, %v1493
    %v1495 = vpop.f32.mrf.mxu0
    %1496 = vmatprep.mubr.bf16.mxu0 0
    %1497 = vmatmul.mubr.bf16.gmra.mxu0 %v1454
    %v1498 = vpop.f32.mrf.mxu0
    %v1499 = vadd.f32 0.0, %v1498
    %v1500 = vpop.f32.mrf.mxu0
    %v1501 = vpop.f32.mrf.mxu0
    %v1502 = vadd.f32 0.0, %v1501
    %v1503 = vpop.f32.mrf.mxu0
    %1504 = vdwg.mxu0
    %v1506 = vsel %vm83, %v1353, 0
    %v1509 = vsel %vm83, %v1354, 0
    %1511 = vmatprep.subr.bf16.mxu0 0
    %1512 = vmatpush1.bf16.msra.mxu0 0
    %1513 = vmatprep.subr.bf16.mxu0 0
    %1514 = vmatpush1.bf16.msra.mxu0 0
    %1515 = vmatprep.subr.bf16.mxu0 0
    %1516 = vmatpush1.bf16.msra.mxu0 0
    %1517 = vmatprep.subr.bf16.mxu0 0
    %1518 = vmatpush1.bf16.msra.mxu0 0
    %1519 = vmatprep.subr.bf16.mxu0 0
    %1520 = vmatpush1.bf16.msra.mxu0 0
    %1521 = vmatprep.subr.bf16.mxu0 0
    %1522 = vmatpush1.bf16.msra.mxu0 0
    %1523 = vmatprep.subr.bf16.mxu0 0
    %1524 = vmatpush1.bf16.msra.mxu0 %v1441
    %1525 = vmatprep.subr.bf16.mxu0 0
    %1526 = vmatpush1.bf16.msra.mxu0 %v1440
    %1527 = vmatprep.subr.bf16.mxu0 0
    %1528 = vmatpush2.bf16.msra.mxu0 0
    %1529 = vmatprep.subr.bf16.mxu0 0
    %1530 = vmatpush2.bf16.msra.mxu0 0
    %1531 = vmatprep.subr.bf16.mxu0 0
    %1532 = vmatpush2.bf16.msra.mxu0 0
    %1533 = vmatprep.subr.bf16.mxu0 0
    %1534 = vmatpush2.bf16.msra.mxu0 0
    %1535 = vmatprep.subr.bf16.mxu0 0
    %1536 = vmatpush2.bf16.msra.mxu0 0
    %1537 = vmatprep.subr.bf16.mxu0 0
    %1538 = vmatpush2.bf16.msra.mxu0 0
    %1539 = vmatprep.subr.bf16.mxu0 0
    %1540 = vmatpush2.bf16.msra.mxu0 0
    %1541 = vmatprep.subr.bf16.mxu0 0
    %1542 = vmatpush2.bf16.msra.mxu0 0
    %1543 = vmatprep.mubr.bf16.mxu0 0
    %1544 = vmatmul.mubr.bf16.gmra.mxu0 %v1506
    %v1545 = vpop.f32.mrf.mxu0
    %v1546 = vadd.f32 %v1491, %v1545
    %v1547 = vpop.f32.mrf.mxu0
    %v1548 = vpop.f32.mrf.mxu0
    %v1549 = vadd.f32 %v1494, %v1548
    %v1550 = vpop.f32.mrf.mxu0
    %1551 = vmatprep.mubr.bf16.mxu0 0
    %1552 = vmatmul.mubr.bf16.gmra.mxu0 %v1509
    %v1553 = vpop.f32.mrf.mxu0
    %v1554 = vadd.f32 %v1499, %v1553
    %v1555 = vpop.f32.mrf.mxu0
    %v1556 = vpop.f32.mrf.mxu0
    %v1557 = vadd.f32 %v1502, %v1556
    %v1558 = vpop.f32.mrf.mxu0
    %1559 = vdwg.mxu0
    %v1560 = vld [vmem:[#allocation2 + $0x1a8] sm:$0xff]
    %v1561 = vld [vmem:[#allocation2 + $0x1b0] sm:$0xff]
    %v1562 = vld [vmem:[#allocation2 + $0x1b8] sm:$0xff]
    %v1563 = vld [vmem:[#allocation2 + $0x1c0] sm:$0xff]
    %v1564 = vpack.c.bf16 %v1561, %v1560
    %v1565 = vpack.c.bf16 %v1563, %v1562
    %v1566 = vpack.c.bf16 %v1409, %v1406
    %v1567 = vpack.c.bf16 %v1417, %v1414
    %v1569 = vsel %vm83, %v1566, 0
    %v1572 = vsel %vm83, %v1567, 0
    %1574 = vmatprep.subr.bf16.mxu0 0
    %1575 = vmatpush1.bf16.msra.mxu0 0
    %1576 = vmatprep.subr.bf16.mxu0 0
    %1577 = vmatpush1.bf16.msra.mxu0 0
    %1578 = vmatprep.subr.bf16.mxu0 0
    %1579 = vmatpush1.bf16.msra.mxu0 0
    %1580 = vmatprep.subr.bf16.mxu0 0
    %1581 = vmatpush1.bf16.msra.mxu0 0
    %1582 = vmatprep.subr.bf16.mxu0 0
    %1583 = vmatpush1.bf16.msra.mxu0 0
    %1584 = vmatprep.subr.bf16.mxu0 0
    %1585 = vmatpush1.bf16.msra.mxu0 0
    %1586 = vmatprep.subr.bf16.mxu0 0
    %1587 = vmatpush1.bf16.msra.mxu0 %v1565
    %1588 = vmatprep.subr.bf16.mxu0 0
    %1589 = vmatpush1.bf16.msra.mxu0 %v1564
    %1590 = vmatprep.subr.bf16.mxu0 0
    %1591 = vmatpush2.bf16.msra.mxu0 0
    %1592 = vmatprep.subr.bf16.mxu0 0
    %1593 = vmatpush2.bf16.msra.mxu0 0
    %1594 = vmatprep.subr.bf16.mxu0 0
    %1595 = vmatpush2.bf16.msra.mxu0 0
    %1596 = vmatprep.subr.bf16.mxu0 0
    %1597 = vmatpush2.bf16.msra.mxu0 0
    %1598 = vmatprep.subr.bf16.mxu0 0
    %1599 = vmatpush2.bf16.msra.mxu0 0
    %1600 = vmatprep.subr.bf16.mxu0 0
    %1601 = vmatpush2.bf16.msra.mxu0 0
    %1602 = vmatprep.subr.bf16.mxu0 0
    %1603 = vmatpush2.bf16.msra.mxu0 0
    %1604 = vmatprep.subr.bf16.mxu0 0
    %1605 = vmatpush2.bf16.msra.mxu0 0
    %1606 = vmatprep.mubr.bf16.mxu0 0
    %1607 = vmatmul.mubr.bf16.gmra.mxu0 %v1569
    %v1608 = vpop.f32.mrf.mxu0
    %v1609 = vadd.f32 0.0, %v1608
    %v1610 = vpop.f32.mrf.mxu0
    %v1611 = vpop.f32.mrf.mxu0
    %v1612 = vadd.f32 0.0, %v1611
    %v1613 = vpop.f32.mrf.mxu0
    %1614 = vmatprep.mubr.bf16.mxu0 0
    %1615 = vmatmul.mubr.bf16.gmra.mxu0 %v1572
    %v1616 = vpop.f32.mrf.mxu0
    %v1617 = vadd.f32 0.0, %v1616
    %v1618 = vpop.f32.mrf.mxu0
    %v1619 = vpop.f32.mrf.mxu0
    %v1620 = vadd.f32 0.0, %v1619
    %v1621 = vpop.f32.mrf.mxu0
    %1622 = vdwg.mxu0
    %v1623 = vadd.f32 %v1546, %v1609
    %v1624 = vadd.f32 %v1549, %v1612
    %v1625 = vadd.f32 %v1554, %v1617
    %v1626 = vadd.f32 %v1557, %v1620
    %v1627 = vld [vmem:[#allocation2 + $0x1c8] sm:$0xff]
    %v1628 = vld [vmem:[#allocation2 + $0x1d0] sm:$0xff]
    %v1629 = vld [vmem:[#allocation2 + $0x1d8] sm:$0xff]
    %v1630 = vld [vmem:[#allocation2 + $0x1e0] sm:$0xff]
    %v1631 = vpack.c.bf16 %v1628, %v1627
    %v1632 = vpack.c.bf16 %v1630, %v1629
    %v1633 = vpack.c.bf16 %v1425, %v1422
    %v1634 = vpack.c.bf16 %v1433, %v1430
    %v1636 = vsel %vm83, %v1633, 0
    %v1639 = vsel %vm83, %v1634, 0
    %1641 = vmatprep.subr.bf16.mxu0 0
    %1642 = vmatpush1.bf16.msra.mxu0 0
    %1643 = vmatprep.subr.bf16.mxu0 0
    %1644 = vmatpush1.bf16.msra.mxu0 0
    %1645 = vmatprep.subr.bf16.mxu0 0
    %1646 = vmatpush1.bf16.msra.mxu0 0
    %1647 = vmatprep.subr.bf16.mxu0 0
    %1648 = vmatpush1.bf16.msra.mxu0 0
    %1649 = vmatprep.subr.bf16.mxu0 0
    %1650 = vmatpush1.bf16.msra.mxu0 0
    %1651 = vmatprep.subr.bf16.mxu0 0
    %1652 = vmatpush1.bf16.msra.mxu0 0
    %1653 = vmatprep.subr.bf16.mxu0 0
    %1654 = vmatpush1.bf16.msra.mxu0 %v1632
    %1655 = vmatprep.subr.bf16.mxu0 0
    %1656 = vmatpush1.bf16.msra.mxu0 %v1631
    %1657 = vmatprep.subr.bf16.mxu0 0
    %1658 = vmatpush2.bf16.msra.mxu0 0
    %1659 = vmatprep.subr.bf16.mxu0 0
    %1660 = vmatpush2.bf16.msra.mxu0 0
    %1661 = vmatprep.subr.bf16.mxu0 0
    %1662 = vmatpush2.bf16.msra.mxu0 0
    %1663 = vmatprep.subr.bf16.mxu0 0
    %1664 = vmatpush2.bf16.msra.mxu0 0
    %1665 = vmatprep.subr.bf16.mxu0 0
    %1666 = vmatpush2.bf16.msra.mxu0 0
    %1667 = vmatprep.subr.bf16.mxu0 0
    %1668 = vmatpush2.bf16.msra.mxu0 0
    %1669 = vmatprep.subr.bf16.mxu0 0
    %1670 = vmatpush2.bf16.msra.mxu0 0
    %1671 = vmatprep.subr.bf16.mxu0 0
    %1672 = vmatpush2.bf16.msra.mxu0 0
    %1673 = vmatprep.mubr.bf16.mxu0 0
    %1674 = vmatmul.mubr.bf16.gmra.mxu0 %v1636
    %v1675 = vpop.f32.mrf.mxu0
    %v1676 = vadd.f32 0.0, %v1675
    %v1677 = vpop.f32.mrf.mxu0
    %v1678 = vpop.f32.mrf.mxu0
    %v1679 = vadd.f32 0.0, %v1678
    %v1680 = vpop.f32.mrf.mxu0
    %1681 = vmatprep.mubr.bf16.mxu0 0
    %1682 = vmatmul.mubr.bf16.gmra.mxu0 %v1639
    %v1683 = vpop.f32.mrf.mxu0
    %v1684 = vadd.f32 0.0, %v1683
    %v1685 = vpop.f32.mrf.mxu0
    %v1686 = vpop.f32.mrf.mxu0
    %v1687 = vadd.f32 0.0, %v1686
    %v1688 = vpop.f32.mrf.mxu0
    %1689 = vdwg.mxu0
    %v1690 = vadd.f32 %v1623, %v1676
    %v1691 = vadd.f32 %v1624, %v1679
    %v1692 = vadd.f32 %v1625, %v1684
    %v1693 = vadd.f32 %v1626, %v1687
    %v1694 = vld [vmem:[#allocation2 + $0x208] sm:$0x1]
    %v1695 = vlaneseq
    %v1696 = vshrl.u32 %v1695, 7
    %v1697 = vsub.s32 0, %v1696
    %v1698 = vrot.slane %v1694, %v1697
    %v1699 = vadd.f32 %v1690, %v1698
    %v1700 = vadd.f32 %v1691, %v1698
    %v1701 = vadd.f32 %v1692, %v1698
    %v1702 = vadd.f32 %v1693, %v1698
    %1703 = vst [vmem:[%s3] sm:$0xff] %v1699
    %1704 = vst [vmem:[%s3 + $0x8] sm:$0xff] %v1700
    %1705 = vst [vmem:[%s3 + $0x10] sm:$0xff] %v1701
    %1706 = vst [vmem:[%s3 + $0x18] sm:$0xff] %v1702
    // Predicated region
    $region18: #{forward.1} parent=1 // pred_check
      _
    $region19: #{forward.1} parent=1 // pred_check_branch
      %1708 = sbr.rel (0) target = $region21
    $region20: #{forward.1} parent=1 // pred_region
      _
    $region21: #{forward.1} parent=1 // pred_fallthru
      _
    // Predicated region
    $region22: #{forward.1} parent=1 // pred_check
      _
    $region23: #{forward.1} parent=1 // pred_check_branch
      %1710 = sbr.rel (0) target = $region25
    $region24: #{forward.1} parent=1 // pred_region
      _
    $region25: #{forward.1} parent=1 // pred_fallthru
      _
    %1711 = vsyncpa [#allocation3], 1

</llo_original>
